<compile_context>
chip_gen: v6e
topology: v6e:2x2x1
jax: 0.10.0
libtpu: 0.0.40
codegen_flags: <defaults>
</compile_context>

<pallas_src>
import jax
import jax.numpy as jnp
from jax.experimental import pallas as pl
from jax.experimental.pallas import tpu as pltpu

VOCAB_SIZE = 10000
EMBEDDING_DIM = 100
HIDDEN_DIM = 256
PADDED_DIM = 128              # EMBEDDING_DIM rounded up to the 128-lane width
_MAX_TOKENS_PER_CALL = 32768  # caps the 1-D SMEM id buffer at 128 KiB per call


def _round_up(x, m):
    return (x + m - 1) // m * m


def _autoencoder_kernel(ids_ref,     # SMEM  [n_pad]        int32 (scalar prefetch)
                        table_ref,   # VMEM  [VOCAB, 128]   f32  (constant index map)
                        w1_ref,      # VMEM  [128, 256]     f32
                        b1_ref,      # VMEM  [1, 256]       f32
                        w2_ref,      # VMEM  [256, 128]     f32
                        b2_ref,      # VMEM  [1, 128]       f32
                        out_ref,     # VMEM  [tile_n, 128]  f32
                        emb_buf):    # VMEM  [tile_n, 128]  f32 scratch
    tile_n = out_ref.shape[0]
    base = pl.program_id(0) * tile_n

    # ---- gather: tile_n dynamic row loads from the VMEM-resident table ----
    @pl.loop(0, tile_n)
    def _(r):
        tok = ids_ref[base + r]                       # already clamped in wrapper
        emb_buf[pl.ds(r, 1), :] = table_ref[pl.ds(tok, 1), :]

    emb = emb_buf[...]                                # (tile_n, 128)

    # ---- encoder: Linear(128->256) + ReLU (padded rows/cols are zero: exact) ----
    h = jnp.dot(emb, w1_ref[...], preferred_element_type=jnp.float32) + b1_ref[...]
    h = jnp.maximum(h, 0.0)

    # ---- decoder: Linear(256->128) + Sigmoid ----
    o = jnp.dot(h, w2_ref[...], preferred_element_type=jnp.float32) + b2_ref[...]
    out_ref[...] = jax.nn.sigmoid(o)


def _pick_tile(n, requested):
    """Rows per grid step: multiple of 8 (sublane constraint), large enough to
    amortize per-step overhead, and the grid keeps >= 2 steps when possible so
    both v7x TensorCores get work under dimension_semantics=("parallel",)."""
    t = min(requested, _round_up(n, 8))
    t = max(8, (t // 8) * 8)
    if n > 8 and _round_up(n, t) // t < 2:
        t = max(8, _round_up((n + 1) // 2, 8))
    return t


def _build_call(tile_n, n_pad, single_buffer_consts):
    def const_spec(shape):
        if single_buffer_consts:
            return pl.BlockSpec(shape, lambda i, ids: (0, 0),
                                pipeline_mode=pl.Buffered(1))
        return pl.BlockSpec(shape, lambda i, ids: (0, 0))

    return pl.pallas_call(
        _autoencoder_kernel,
        out_shape=jax.ShapeDtypeStruct((n_pad, PADDED_DIM), jnp.float32),
        grid_spec=pltpu.PrefetchScalarGridSpec(
            num_scalar_prefetch=1,
            grid=(n_pad // tile_n,),
            in_specs=[
                const_spec((VOCAB_SIZE, PADDED_DIM)),   # embedding table (VMEM)
                const_spec((PADDED_DIM, HIDDEN_DIM)),   # w1
                const_spec((1, HIDDEN_DIM)),            # b1
                const_spec((HIDDEN_DIM, PADDED_DIM)),   # w2
                const_spec((1, PADDED_DIM)),            # b2
            ],
            out_specs=pl.BlockSpec((tile_n, PADDED_DIM), lambda i, ids: (i, 0)),
            scratch_shapes=[pltpu.VMEM((tile_n, PADDED_DIM), jnp.float32)],
        ),
        compiler_params=pltpu.CompilerParams(
            dimension_semantics=("parallel",),
            vmem_limit_bytes=32 << 20,
        ),
    )


def _forward_flat(ids_flat, params, tile_n_req):
    table_p, w1_p, b1_p, w2_p, b2_p = params
    n = ids_flat.shape[0]
    tile_n = _pick_tile(n, tile_n_req)
    n_pad = _round_up(n, tile_n)
    ids = jnp.zeros((n_pad,), jnp.int32).at[:n].set(ids_flat)   # pad tokens = id 0
    args = (ids, table_p, w1_p, b1_p, w2_p, b2_p)
    try:
        out = _build_call(tile_n, n_pad, True)(*args)
    except Exception:
        # Fallback for JAX builds without single-buffer pipeline_mode support;
        # full double-buffering still fits VMEM (~13 MB) on every generation.
        out = _build_call(tile_n, n_pad, False)(*args)
    return out[:n, :EMBEDDING_DIM]


def prepare_params(table, w1, b1, w2, b2):
    """One-time parameter prep (hoisted out of the hot path): zero-pad the
    feature dim 100 -> 128.  Zero rows/cols contribute nothing, so results are
    bit-equivalent to the unpadded math; extra output lanes are sliced off."""
    table_p = jnp.zeros((VOCAB_SIZE, PADDED_DIM), jnp.float32)
    table_p = table_p.at[:, :EMBEDDING_DIM].set(table)
    w1_p = jnp.zeros((PADDED_DIM, HIDDEN_DIM), jnp.float32)
    w1_p = w1_p.at[:EMBEDDING_DIM, :].set(w1)
    b1_p = jnp.asarray(b1, jnp.float32).reshape(1, HIDDEN_DIM)
    w2_p = jnp.zeros((HIDDEN_DIM, PADDED_DIM), jnp.float32)
    w2_p = w2_p.at[:, :EMBEDDING_DIM].set(w2)
    b2_p = jnp.zeros((1, PADDED_DIM), jnp.float32)
    b2_p = b2_p.at[:, :EMBEDDING_DIM].set(b2)
    return table_p, w1_p, b1_p, w2_p, b2_p


def autoencoder_forward(tokens, params, *, tile_n=1024):
    """tokens: int [B, S]; params from prepare_params(); returns f32 [B, S, 100]."""
    B, S = tokens.shape
    N = B * S
    # Clamp once, vectorized (PyTorch nn.Embedding would error on OOB ids).
    ids = jnp.clip(tokens.reshape(N).astype(jnp.int32), 0, VOCAB_SIZE - 1)
    if N <= _MAX_TOKENS_PER_CALL:
        out = _forward_flat(ids, params, tile_n)
    else:
        chunks = [_forward_flat(ids[s:s + _MAX_TOKENS_PER_CALL], params, tile_n)
                  for s in range(0, N, _MAX_TOKENS_PER_CALL)]
        out = jnp.concatenate(chunks, axis=0)
    return out.reshape(B, S, EMBEDDING_DIM)


def _init_params(key):
    """Deterministic parameter init (shapes match the PyTorch module)."""
    k_emb, k_w1, k_b1, k_w2, k_b2 = jax.random.split(key, 5)
    table = jax.random.normal(k_emb, (VOCAB_SIZE, EMBEDDING_DIM), jnp.float32)
    lim1 = 1.0 / jnp.sqrt(EMBEDDING_DIM)       # Linear(100 -> 256), stored (in, out)
    w1 = jax.random.uniform(k_w1, (EMBEDDING_DIM, HIDDEN_DIM), jnp.float32, -lim1, lim1)
    b1 = jax.random.uniform(k_b1, (HIDDEN_DIM,), jnp.float32, -lim1, lim1)
    lim2 = 1.0 / jnp.sqrt(HIDDEN_DIM)          # Linear(256 -> 100)
    w2 = jax.random.uniform(k_w2, (HIDDEN_DIM, EMBEDDING_DIM), jnp.float32, -lim2, lim2)
    b2 = jax.random.uniform(k_b2, (EMBEDDING_DIM,), jnp.float32, -lim2, lim2)
    return table, w1, b1, w2, b2


def _reference_forward(tokens, table, w1, b1, w2, b2):
    emb = table[tokens]                              # (B, S, D)
    h = jnp.maximum(emb @ w1 + b1, 0.0)              # (B, S, H)
    return jax.nn.sigmoid(h @ w2 + b2)               # (B, S, D)


if __name__ == "__main__":
    key = jax.random.PRNGKey(0)
    k_tok, k_params = jax.random.split(key)

    B, S = 2, 8
    tokens = jax.random.randint(k_tok, (B, S), 0, VOCAB_SIZE, dtype=jnp.int32)
    table, w1, b1, w2, b2 = _init_params(k_params)

    params = prepare_params(table, w1, b1, w2, b2)   # one-time prep, not hot path
    out = autoencoder_forward(tokens, params)
    out = jax.block_until_ready(out)

    ref = _reference_forward(tokens, table, w1, b1, w2, b2)
    assert out.shape == (B, S, EMBEDDING_DIM), out.shape
    assert jnp.allclose(out, ref, atol=1e-5, rtol=1e-5), "mismatch vs reference"

    print("KERNEL_OK")
</pallas_src>

<mosaic_0001>
module attributes {stable_mosaic.version = 11 : i64} {
  func.func @_autoencoder_kernel(%arg0: i32, %arg1: memref<16xi32, #tpu.memory_space<smem>>, %arg2: memref<10000x128xf32, #tpu.memory_space<vmem>>, %arg3: memref<128x256xf32, #tpu.memory_space<vmem>>, %arg4: memref<1x256xf32, #tpu.memory_space<vmem>>, %arg5: memref<256x128xf32, #tpu.memory_space<vmem>>, %arg6: memref<1x128xf32, #tpu.memory_space<vmem>>, %arg7: memref<8x128xf32, #tpu.memory_space<vmem>>, %arg8: memref<8x128xf32, #tpu.memory_space<vmem>>) attributes {dimension_semantics = [#tpu.dimension_semantics<parallel>], iteration_bounds = array<i64: 2>, scalar_prefetch = 1 : i64, scratch_operands = 1 : i64, tpu.core_type = #tpu.core_type<tc>, window_params = [{pipeline_mode = #tpu.pipeline_mode<synchronous>, transform_indices = @transform_0, window_bounds = array<i64: 10000, 128>}, {pipeline_mode = #tpu.pipeline_mode<synchronous>, transform_indices = @transform_1, window_bounds = array<i64: 128, 256>}, {pipeline_mode = #tpu.pipeline_mode<synchronous>, transform_indices = @transform_2, window_bounds = array<i64: 1, 256>}, {pipeline_mode = #tpu.pipeline_mode<synchronous>, transform_indices = @transform_3, window_bounds = array<i64: 256, 128>}, {pipeline_mode = #tpu.pipeline_mode<synchronous>, transform_indices = @transform_4, window_bounds = array<i64: 1, 128>}, {transform_indices = @transform_5, window_bounds = array<i64: 8, 128>}]} {
    %c8_i32 = arith.constant 8 : i32
    %0 = arith.muli %arg0, %c8_i32 : i32
    %c0_i32 = arith.constant 0 : i32
    %c8_i32_0 = arith.constant 8 : i32
    %1 = arith.addi %c0_i32, %c8_i32_0 : i32
    %c1_i32 = arith.constant 1 : i32
    scf.for %arg9 = %c0_i32 to %1 step %c1_i32  : i32 {
      %c1_i32_16 = arith.constant 1 : i32
      %21 = arith.muli %arg9, %c1_i32_16 : i32
      %c0_i32_17 = arith.constant 0 : i32
      %22 = arith.addi %c0_i32_17, %21 : i32
      %23 = arith.addi %0, %22 : i32
      %24 = arith.index_cast %23 : i32 to index
      %25 = memref.load %arg1[%24] : memref<16xi32, #tpu.memory_space<smem>>
      %26 = arith.index_cast %25 : i32 to index
      %c0_18 = arith.constant 0 : index
      %27 = vector.load %arg2[%26, %c0_18] : memref<10000x128xf32, #tpu.memory_space<vmem>>, vector<1x128xf32>
      %28 = arith.index_cast %22 : i32 to index
      %c0_19 = arith.constant 0 : index
      %29 = vector.load %arg8[%28, %c0_19] : memref<8x128xf32, #tpu.memory_space<vmem>>, vector<1x128xf32>
      tpu.vector_store %arg8[%28, %c0_19], %27 {strides = array<i32>} : memref<8x128xf32, #tpu.memory_space<vmem>>, vector<1x128xf32>,
    }
    %c8_i32_1 = arith.constant 8 : i32
    %c0 = arith.constant 0 : index
    %c0_2 = arith.constant 0 : index
    %2 = vector.load %arg8[%c0, %c0_2] : memref<8x128xf32, #tpu.memory_space<vmem>>, vector<8x128xf32>
    %c0_3 = arith.constant 0 : index
    %c0_4 = arith.constant 0 : index
    %3 = vector.load %arg3[%c0_3, %c0_4] : memref<128x256xf32, #tpu.memory_space<vmem>>, vector<128x256xf32>
    %cst = arith.constant dense<0.000000e+00> : vector<8x256xf32>
    %4 = tpu.matmul %2, %3, %cst {dimension_numbers = #tpu.dot_dimension_numbers<[1], [0], [0], [1], [0, 0, 1, 1], [], []>} : vector<8x128xf32>, vector<128x256xf32>, vector<8x256xf32> -> vector<8x256xf32>
    %c0_5 = arith.constant 0 : index
    %c0_6 = arith.constant 0 : index
    %5 = vector.load %arg4[%c0_5, %c0_6] : memref<1x256xf32, #tpu.memory_space<vmem>>, vector<1x256xf32>
    %6 = vector.broadcast %5 : vector<1x256xf32> to vector<8x256xf32>
    %7 = arith.addf %4, %6 : vector<8x256xf32>
    %cst_7 = arith.constant 0.000000e+00 : f32
    %8 = vector.broadcast %cst_7 : f32 to vector<8x256xf32>
    %9 = arith.maximumf %7, %8 : vector<8x256xf32>
    %c0_8 = arith.constant 0 : index
    %c0_9 = arith.constant 0 : index
    %10 = vector.load %arg5[%c0_8, %c0_9] : memref<256x128xf32, #tpu.memory_space<vmem>>, vector<256x128xf32>
    %cst_10 = arith.constant dense<0.000000e+00> : vector<8x128xf32>
    %11 = tpu.matmul %9, %10, %cst_10 {dimension_numbers = #tpu.dot_dimension_numbers<[1], [0], [0], [1], [0, 0, 1, 1], [], []>} : vector<8x256xf32>, vector<256x128xf32>, vector<8x128xf32> -> vector<8x128xf32>
    %c0_11 = arith.constant 0 : index
    %c0_12 = arith.constant 0 : index
    %12 = vector.load %arg6[%c0_11, %c0_12] : memref<1x128xf32, #tpu.memory_space<vmem>>, vector<1x128xf32>
    %13 = vector.broadcast %12 : vector<1x128xf32> to vector<8x128xf32>
    %14 = arith.addf %11, %13 : vector<8x128xf32>
    %15 = arith.negf %14 : vector<8x128xf32>
    %16 = math.exp %15 : vector<8x128xf32>
    %cst_13 = arith.constant 1.000000e+00 : f32
    %17 = vector.broadcast %cst_13 : f32 to vector<8x128xf32>
    %18 = arith.addf %17, %16 : vector<8x128xf32>
    %19 = arith.divf %17, %18 : vector<8x128xf32>
    %c0_14 = arith.constant 0 : index
    %c0_15 = arith.constant 0 : index
    %20 = vector.load %arg7[%c0_14, %c0_15] : memref<8x128xf32, #tpu.memory_space<vmem>>, vector<8x128xf32>
    tpu.vector_store %arg7[%c0_14, %c0_15], %19 {strides = array<i32>} : memref<8x128xf32, #tpu.memory_space<vmem>>, vector<8x128xf32>,
    return
  }
  func.func @transform_0(%arg0: i32, %arg1: memref<16xi32, #tpu.memory_space<smem>>) -> (i32, i32) {
    %c0_i32 = arith.constant 0 : i32
    %c0_i32_0 = arith.constant 0 : i32
    %c0_i32_1 = arith.constant 0 : i32
    return %c0_i32, %c0_i32_0 : i32, i32
  }
  func.func @transform_1(%arg0: i32, %arg1: memref<16xi32, #tpu.memory_space<smem>>) -> (i32, i32) {
    %c0_i32 = arith.constant 0 : i32
    %c0_i32_0 = arith.constant 0 : i32
    %c0_i32_1 = arith.constant 0 : i32
    return %c0_i32, %c0_i32_0 : i32, i32
  }
  func.func @transform_2(%arg0: i32, %arg1: memref<16xi32, #tpu.memory_space<smem>>) -> (i32, i32) {
    %c0_i32 = arith.constant 0 : i32
    %c0_i32_0 = arith.constant 0 : i32
    %c0_i32_1 = arith.constant 0 : i32
    return %c0_i32, %c0_i32_0 : i32, i32
  }
  func.func @transform_3(%arg0: i32, %arg1: memref<16xi32, #tpu.memory_space<smem>>) -> (i32, i32) {
    %c0_i32 = arith.constant 0 : i32
    %c0_i32_0 = arith.constant 0 : i32
    %c0_i32_1 = arith.constant 0 : i32
    return %c0_i32, %c0_i32_0 : i32, i32
  }
  func.func @transform_4(%arg0: i32, %arg1: memref<16xi32, #tpu.memory_space<smem>>) -> (i32, i32) {
    %c0_i32 = arith.constant 0 : i32
    %c0_i32_0 = arith.constant 0 : i32
    %c0_i32_1 = arith.constant 0 : i32
    return %c0_i32, %c0_i32_0 : i32, i32
  }
  func.func @transform_5(%arg0: i32, %arg1: memref<16xi32, #tpu.memory_space<smem>>) -> (i32, i32) {
    %c0_i32 = arith.constant 0 : i32
    %c0_i32_0 = arith.constant 0 : i32
    return %arg0, %c0_i32 : i32, i32
  }
}

module attributes {stable_mosaic.version = 11 : i64} {
  func.func @_autoencoder_kernel(%arg0: i32, %arg1: memref<16xi32, #tpu.memory_space<smem>>, %arg2: memref<10000x128xf32, #tpu.memory_space<vmem>>, %arg3: memref<128x256xf32, #tpu.memory_space<vmem>>, %arg4: memref<1x256xf32, #tpu.memory_space<vmem>>, %arg5: memref<256x128xf32, #tpu.memory_space<vmem>>, %arg6: memref<1x128xf32, #tpu.memory_space<vmem>>, %arg7: memref<8x128xf32, #tpu.memory_space<vmem>>, %arg8: memref<8x128xf32, #tpu.memory_space<vmem>>) attributes {dimension_semantics = [#tpu.dimension_semantics<parallel>], iteration_bounds = array<i64: 2>, scalar_prefetch = 1 : i64, scratch_operands = 1 : i64, tpu.core_type = #tpu.core_type<tc>, window_params = [{pipeline_mode = #tpu.pipeline_mode<synchronous>, transform_indices = @transform_0, window_bounds = array<i64: 10000, 128>}, {pipeline_mode = #tpu.pipeline_mode<synchronous>, transform_indices = @transform_1, window_bounds = array<i64: 128, 256>}, {pipeline_mode = #tpu.pipeline_mode<synchronous>, transform_indices = @transform_2, window_bounds = array<i64: 1, 256>}, {pipeline_mode = #tpu.pipeline_mode<synchronous>, transform_indices = @transform_3, window_bounds = array<i64: 256, 128>}, {pipeline_mode = #tpu.pipeline_mode<synchronous>, transform_indices = @transform_4, window_bounds = array<i64: 1, 128>}, {transform_indices = @transform_5, window_bounds = array<i64: 8, 128>}]} {
    %c8_i32 = arith.constant 8 : i32
    %0 = arith.muli %arg0, %c8_i32 : i32
    %c0_i32 = arith.constant 0 : i32
    %c8_i32_0 = arith.constant 8 : i32
    %1 = arith.addi %c0_i32, %c8_i32_0 : i32
    %c1_i32 = arith.constant 1 : i32
    scf.for %arg9 = %c0_i32 to %1 step %c1_i32  : i32 {
      %c1_i32_16 = arith.constant 1 : i32
      %21 = arith.muli %arg9, %c1_i32_16 : i32
      %c0_i32_17 = arith.constant 0 : i32
      %22 = arith.addi %c0_i32_17, %21 : i32
      %23 = arith.addi %0, %22 : i32
      %24 = arith.index_cast %23 : i32 to index
      %25 = memref.load %arg1[%24] : memref<16xi32, #tpu.memory_space<smem>>
      %26 = arith.index_cast %25 : i32 to index
      %c0_18 = arith.constant 0 : index
      %27 = vector.load %arg2[%26, %c0_18] : memref<10000x128xf32, #tpu.memory_space<vmem>>, vector<1x128xf32>
      %28 = arith.index_cast %22 : i32 to index
      %c0_19 = arith.constant 0 : index
      %29 = vector.load %arg8[%28, %c0_19] : memref<8x128xf32, #tpu.memory_space<vmem>>, vector<1x128xf32>
      tpu.vector_store %arg8[%28, %c0_19], %27 {strides = array<i32>} : memref<8x128xf32, #tpu.memory_space<vmem>>, vector<1x128xf32>,
    }
    %c8_i32_1 = arith.constant 8 : i32
    %c0 = arith.constant 0 : index
    %c0_2 = arith.constant 0 : index
    %2 = vector.load %arg8[%c0, %c0_2] : memref<8x128xf32, #tpu.memory_space<vmem>>, vector<8x128xf32>
    %c0_3 = arith.constant 0 : index
    %c0_4 = arith.constant 0 : index
    %3 = vector.load %arg3[%c0_3, %c0_4] : memref<128x256xf32, #tpu.memory_space<vmem>>, vector<128x256xf32>
    %cst = arith.constant dense<0.000000e+00> : vector<8x256xf32>
    %4 = tpu.matmul %2, %3, %cst {dimension_numbers = #tpu.dot_dimension_numbers<[1], [0], [0], [1], [0, 0, 1, 1], [], []>} : vector<8x128xf32>, vector<128x256xf32>, vector<8x256xf32> -> vector<8x256xf32>
    %c0_5 = arith.constant 0 : index
    %c0_6 = arith.constant 0 : index
    %5 = vector.load %arg4[%c0_5, %c0_6] : memref<1x256xf32, #tpu.memory_space<vmem>>, vector<1x256xf32>
    %6 = vector.broadcast %5 : vector<1x256xf32> to vector<8x256xf32>
    %7 = arith.addf %4, %6 : vector<8x256xf32>
    %cst_7 = arith.constant 0.000000e+00 : f32
    %8 = vector.broadcast %cst_7 : f32 to vector<8x256xf32>
    %9 = arith.maximumf %7, %8 : vector<8x256xf32>
    %c0_8 = arith.constant 0 : index
    %c0_9 = arith.constant 0 : index
    %10 = vector.load %arg5[%c0_8, %c0_9] : memref<256x128xf32, #tpu.memory_space<vmem>>, vector<256x128xf32>
    %cst_10 = arith.constant dense<0.000000e+00> : vector<8x128xf32>
    %11 = tpu.matmul %9, %10, %cst_10 {dimension_numbers = #tpu.dot_dimension_numbers<[1], [0], [0], [1], [0, 0, 1, 1], [], []>} : vector<8x256xf32>, vector<256x128xf32>, vector<8x128xf32> -> vector<8x128xf32>
    %c0_11 = arith.constant 0 : index
    %c0_12 = arith.constant 0 : index
    %12 = vector.load %arg6[%c0_11, %c0_12] : memref<1x128xf32, #tpu.memory_space<vmem>>, vector<1x128xf32>
    %13 = vector.broadcast %12 : vector<1x128xf32> to vector<8x128xf32>
    %14 = arith.addf %11, %13 : vector<8x128xf32>
    %15 = arith.negf %14 : vector<8x128xf32>
    %16 = math.exp %15 : vector<8x128xf32>
    %cst_13 = arith.constant 1.000000e+00 : f32
    %17 = vector.broadcast %cst_13 : f32 to vector<8x128xf32>
    %18 = arith.addf %17, %16 : vector<8x128xf32>
    %19 = arith.divf %17, %18 : vector<8x128xf32>
    %c0_14 = arith.constant 0 : index
    %c0_15 = arith.constant 0 : index
    %20 = vector.load %arg7[%c0_14, %c0_15] : memref<8x128xf32, #tpu.memory_space<vmem>>, vector<8x128xf32>
    tpu.vector_store %arg7[%c0_14, %c0_15], %19 {strides = array<i32>} : memref<8x128xf32, #tpu.memory_space<vmem>>, vector<8x128xf32>,
    return
  }
  func.func @transform_0(%arg0: i32, %arg1: memref<16xi32, #tpu.memory_space<smem>>) -> (i32, i32) {
    %c0_i32 = arith.constant 0 : i32
    %c0_i32_0 = arith.constant 0 : i32
    %c0_i32_1 = arith.constant 0 : i32
    return %c0_i32, %c0_i32_0 : i32, i32
  }
  func.func @transform_1(%arg0: i32, %arg1: memref<16xi32, #tpu.memory_space<smem>>) -> (i32, i32) {
    %c0_i32 = arith.constant 0 : i32
    %c0_i32_0 = arith.constant 0 : i32
    %c0_i32_1 = arith.constant 0 : i32
    return %c0_i32, %c0_i32_0 : i32, i32
  }
  func.func @transform_2(%arg0: i32, %arg1: memref<16xi32, #tpu.memory_space<smem>>) -> (i32, i32) {
    %c0_i32 = arith.constant 0 : i32
    %c0_i32_0 = arith.constant 0 : i32
    %c0_i32_1 = arith.constant 0 : i32
    return %c0_i32, %c0_i32_0 : i32, i32
  }
  func.func @transform_3(%arg0: i32, %arg1: memref<16xi32, #tpu.memory_space<smem>>) -> (i32, i32) {
    %c0_i32 = arith.constant 0 : i32
    %c0_i32_0 = arith.constant 0 : i32
    %c0_i32_1 = arith.constant 0 : i32
    return %c0_i32, %c0_i32_0 : i32, i32
  }
  func.func @transform_4(%arg0: i32, %arg1: memref<16xi32, #tpu.memory_space<smem>>) -> (i32, i32) {
    %c0_i32 = arith.constant 0 : i32
    %c0_i32_0 = arith.constant 0 : i32
    %c0_i32_1 = arith.constant 0 : i32
    return %c0_i32, %c0_i32_0 : i32, i32
  }
  func.func @transform_5(%arg0: i32, %arg1: memref<16xi32, #tpu.memory_space<smem>>) -> (i32, i32) {
    %c0_i32 = arith.constant 0 : i32
    %c0_i32_0 = arith.constant 0 : i32
    return %arg0, %c0_i32 : i32, i32
  }
}

</mosaic_0001>

<llo_original>
// kernel: tpu_custom_call.1
$region0: #{tpu_custom_call.1}
  #allocation0 [shape = 'u32[]', space=smem, size = 0x4, offset = 0x4, fixed_abs, tag = 'smem constant byte address 0x4 - core index']
  #allocation1 [shape = 'u32[144,128]{1,0:T(1,128)}', space=vmem, size = 0x12000, scoped, tag = 'internal scratch']
  #allocation2 [shape = 'f32[8,128]{1,0:T(8,128)}', space=vmem, size = 0x1000, scoped, tag = 'scratch operand']
  #allocation3 [shape = 's32[1]{0}', space=sflag, size = 0x4, scoped, tag = 'scoped memory for tpu_custom_call.1']
  #allocation4 [shape = 'u8[512]{0}', space=smem, size = 0x200, scoped, tag = 'prefetched SMEM operand 0']
  %s0 = inlined_call_operand.hbm [shape: s32[16], index: 0, kind: input, shape index: {}]
  %s1 = inlined_call_operand.hbm [shape: f32[10000,128], index: 1, kind: input, shape index: {}]
  %s2 = inlined_call_operand.hbm [shape: f32[128,256], index: 2, kind: input, shape index: {}]
  %s3 = inlined_call_operand.hbm [shape: f32[1,256], index: 3, kind: input, shape index: {}]
  %s4 = inlined_call_operand.hbm [shape: f32[256,128], index: 4, kind: input, shape index: {}]
  %s5 = inlined_call_operand.hbm [shape: f32[1,128], index: 5, kind: input, shape index: {}]
  %s6 = inlined_call_operand.hbm [shape: f32[16,128], index: 6, kind: output, shape index: {}]
  %s7 = sld [smem:[#allocation0]]
  $region80: #{tpu_custom_call.1} parent=0
    _
  %s9 = ssub.s32 1, %s7
  %s10 = scalar_select 0, %s9, %s7
  %12 = dma.hbm_to_smem %s0, 16, [#allocation4], [#allocation3]
  %13 = dma.done [#allocation3], 16
  %14 = sfence
  $region1: #{tpu_custom_call.1} parent=0
    #allocation5 [shape = 'u8[5120000]{0}', space=vmem, size = 0x4e2000, scoped, tag = 'input window, operand 1, single buffered']
    #allocation6 [shape = 's32[2]{0}', space=sflag, size = 0x8, scoped, tag = 'scoped memory for tpu_custom_call.1']
    #allocation7 [shape = 's32[2]{0}', space=sflag, size = 0x8, scoped, tag = 'scoped memory for tpu_custom_call.1']
    #allocation8 [shape = 'u8[131072]{0}', space=vmem, size = 0x20000, scoped, tag = 'input window, operand 2, single buffered']
    #allocation9 [shape = 's32[1]{0}', space=sflag, size = 0x4, scoped, tag = 'scoped memory for tpu_custom_call.1']
    #allocation10 [shape = 'u8[1024]{0}', space=vmem, size = 0x400, scoped, tag = 'input window, operand 3, single buffered']
    #allocation11 [shape = 'u8[131072]{0}', space=vmem, size = 0x20000, scoped, tag = 'input window, operand 4, single buffered']
    #allocation12 [shape = 's32[1]{0}', space=sflag, size = 0x4, scoped, tag = 'scoped memory for tpu_custom_call.1']
    #allocation13 [shape = 'u8[512]{0}', space=vmem, size = 0x400, scoped, tag = 'input window, operand 5, single buffered']
    #allocation14 [shape = 'u8[8192]{0}', space=vmem, size = 0x2000, scoped, tag = 'output window, operand 0']
    %15 = vsyncpa [#allocation6], 0
    %16 = vsyncpa [#allocation9], 0
    %17 = vsyncpa [#allocation12], 0
    %18 = vsyncpa [#allocation7], 0
    %s19 = scalar_lea.sflag [#allocation7], 1
    %20 = vsyncpa %s19, 0
    loop: start=0, step=1, limit=4
    $region2: #{tpu_custom_call.1} parent=1 // loop_pre_header
      _
    $region3: #{tpu_custom_call.1} parent=1 // loop_header
      %s22 = sphi 0, %s26
      %p23 = scmp.ge.s32.totalorder %s22, 4
      %s30 = sphi 0, %s30
      %s32 = sphi 0, %s30
      %s33 = sphi 0, %s32
      %s47 = sphi 0, %s33
      %s51 = sphi 0, %s51
      %s53 = sphi 0, %s51
      %s54 = sphi 0, %s53
      %s68 = sphi 0, %s54
      %s72 = sphi 0, %s72
      %s74 = sphi 0, %s72
      %s75 = sphi 0, %s74
      %s89 = sphi 0, %s75
      %s93 = sphi 0, %s93
      %s95 = sphi 0, %s93
      %s96 = sphi 0, %s95
      %s110 = sphi 0, %s96
      %s114 = sphi 0, %s114
      %s116 = sphi 0, %s114
      %s117 = sphi 0, %s116
      %s131 = sphi 0, %s117
      %s137 = sphi 0, %s139
      %s140 = sphi 0, %s137
      %s141 = sphi 0, %s140
      %s157 = sphi 0, %s141
    $region4: #{tpu_custom_call.1} parent=1 // loop_header_branch
      %25 = sbr.rel (%p23) target = $region8
    $region5: #{tpu_custom_call.1} parent=1 // loop_body
      %s27 = ssub.s32 %s22, 1
      %s28 = ssub.s32 %s22, 2
      %s29 = sadd.s32 %s22, 1
      %s31 = sadd.s32 %s30, 1
      %p34 = scmp.eq.s32.totalorder %s22, 1
      %p35 = scmp.ne.s32.totalorder %s30, %s32
      %p36 = scmp.eq.s32.totalorder %s22, 0
      %p37 = por %p35, %p36
      %p38 = scmp.ne.s32.totalorder %s30, %s32
      %p39 = scmp.eq.s32.totalorder %s27, 1
      %p40 = por %p38, %p39
      %p41 = scmp.ne.s32.totalorder %s32, %s33
      %p42 = scmp.eq.s32.totalorder %s27, 0
      %p43 = por %p41, %p42
      %p44 = scmp.ne.s32.totalorder %s32, %s33
      %p45 = scmp.eq.s32.totalorder %s28, 1
      %p46 = por %p44, %p45
      %p48 = scmp.ne.s32.totalorder %s33, %s47
      %p49 = scmp.eq.s32.totalorder %s28, 0
      %p50 = por %p48, %p49
      %s52 = sadd.s32 %s51, 1
      %p55 = scmp.eq.s32.totalorder %s22, 1
      %p56 = scmp.ne.s32.totalorder %s51, %s53
      %p57 = scmp.eq.s32.totalorder %s22, 0
      %p58 = por %p56, %p57
      %p59 = scmp.ne.s32.totalorder %s51, %s53
      %p60 = scmp.eq.s32.totalorder %s27, 1
      %p61 = por %p59, %p60
      %p62 = scmp.ne.s32.totalorder %s53, %s54
      %p63 = scmp.eq.s32.totalorder %s27, 0
      %p64 = por %p62, %p63
      %p65 = scmp.ne.s32.totalorder %s53, %s54
      %p66 = scmp.eq.s32.totalorder %s28, 1
      %p67 = por %p65, %p66
      %p69 = scmp.ne.s32.totalorder %s54, %s68
      %p70 = scmp.eq.s32.totalorder %s28, 0
      %p71 = por %p69, %p70
      %s73 = sadd.s32 %s72, 1
      %p76 = scmp.eq.s32.totalorder %s22, 1
      %p77 = scmp.ne.s32.totalorder %s72, %s74
      %p78 = scmp.eq.s32.totalorder %s22, 0
      %p79 = por %p77, %p78
      %p80 = scmp.ne.s32.totalorder %s72, %s74
      %p81 = scmp.eq.s32.totalorder %s27, 1
      %p82 = por %p80, %p81
      %p83 = scmp.ne.s32.totalorder %s74, %s75
      %p84 = scmp.eq.s32.totalorder %s27, 0
      %p85 = por %p83, %p84
      %p86 = scmp.ne.s32.totalorder %s74, %s75
      %p87 = scmp.eq.s32.totalorder %s28, 1
      %p88 = por %p86, %p87
      %p90 = scmp.ne.s32.totalorder %s75, %s89
      %p91 = scmp.eq.s32.totalorder %s28, 0
      %p92 = por %p90, %p91
      %s94 = sadd.s32 %s93, 1
      %p97 = scmp.eq.s32.totalorder %s22, 1
      %p98 = scmp.ne.s32.totalorder %s93, %s95
      %p99 = scmp.eq.s32.totalorder %s22, 0
      %p100 = por %p98, %p99
      %p101 = scmp.ne.s32.totalorder %s93, %s95
      %p102 = scmp.eq.s32.totalorder %s27, 1
      %p103 = por %p101, %p102
      %p104 = scmp.ne.s32.totalorder %s95, %s96
      %p105 = scmp.eq.s32.totalorder %s27, 0
      %p106 = por %p104, %p105
      %p107 = scmp.ne.s32.totalorder %s95, %s96
      %p108 = scmp.eq.s32.totalorder %s28, 1
      %p109 = por %p107, %p108
      %p111 = scmp.ne.s32.totalorder %s96, %s110
      %p112 = scmp.eq.s32.totalorder %s28, 0
      %p113 = por %p111, %p112
      %s115 = sadd.s32 %s114, 1
      %p118 = scmp.eq.s32.totalorder %s22, 1
      %p119 = scmp.ne.s32.totalorder %s114, %s116
      %p120 = scmp.eq.s32.totalorder %s22, 0
      %p121 = por %p119, %p120
      %p122 = scmp.ne.s32.totalorder %s114, %s116
      %p123 = scmp.eq.s32.totalorder %s27, 1
      %p124 = por %p122, %p123
      %p125 = scmp.ne.s32.totalorder %s116, %s117
      %p126 = scmp.eq.s32.totalorder %s27, 0
      %p127 = por %p125, %p126
      %p128 = scmp.ne.s32.totalorder %s116, %s117
      %p129 = scmp.eq.s32.totalorder %s28, 1
      %p130 = por %p128, %p129
      %p132 = scmp.ne.s32.totalorder %s117, %s131
      %p133 = scmp.eq.s32.totalorder %s28, 0
      %p134 = por %p132, %p133
      %s135 = ssub.s32 %s22, %s29
      %p136 = scmp.eq.s32.totalorder %s135, 0
      %s138 = sadd.s32 %s137, 1
      %s139 = scalar_select %p136, %s137, %s138
      %p142 = pneg %p136
      %p143 = scmp.eq.s32.totalorder %s22, 1
      %p144 = por %p142, %p143
      %p145 = scmp.ne.s32.totalorder %s137, %s140
      %p146 = scmp.eq.s32.totalorder %s22, 0
      %p147 = por %p145, %p146
      %p148 = scmp.ne.s32.totalorder %s137, %s140
      %p149 = scmp.eq.s32.totalorder %s27, 1
      %p150 = por %p148, %p149
      %p151 = scmp.ne.s32.totalorder %s140, %s141
      %p152 = scmp.eq.s32.totalorder %s27, 0
      %p153 = por %p151, %p152
      %p154 = scmp.ne.s32.totalorder %s140, %s141
      %p155 = scmp.eq.s32.totalorder %s28, 1
      %p156 = por %p154, %p155
      %p158 = scmp.ne.s32.totalorder %s141, %s157
      %p159 = scmp.eq.s32.totalorder %s28, 0
      %p160 = por %p158, %p159
      %p161 = scmp.le.s32.totalorder 1, %s22
      %p162 = scmp.lt.s32.totalorder %s22, 3
      %p163 = pnand %p161, %p162
      %p164 = pneg %p163
      // Predicated region
      $region9: #{tpu_custom_call.1} parent=5 // pred_check
        _
      $region10: #{tpu_custom_call.1} parent=5 // pred_check_branch
        %166 = sbr.rel (%p163) target = $region12
      $region11: #{tpu_custom_call.1} parent=5 // pred_region
        %s167 = ssub.s32 %s22, 1
        // Predicated region
        $region13: #{tpu_custom_call.1} parent=11 // pred_check
          %p168 = pneg %p43
        $region14: #{tpu_custom_call.1} parent=11 // pred_check_branch
          %170 = sbr.rel (%p168) target = $region16
        $region15: #{tpu_custom_call.1} parent=11 // pred_region
          %s172 = ssub.s32 160000, 160000
          %173 = vsyncadd [#allocation6], %s172
          %s174 = sshll.u32 [#allocation5], 4
          %s175 = int_to_ptr.vmem [resolvable:$true] %s174
          %180 = dma.hbm_to_vmem [thread:$0]  %s1, 160000, %s175, [#allocation6], 128, 128, 8
        $region16: #{tpu_custom_call.1} parent=11 // pred_fallthru
          _
        // Predicated region
        $region17: #{tpu_custom_call.1} parent=11 // pred_check
          %p181 = pneg %p64
        $region18: #{tpu_custom_call.1} parent=11 // pred_check_branch
          %183 = sbr.rel (%p181) target = $region20
        $region19: #{tpu_custom_call.1} parent=11 // pred_region
          %s185 = ssub.s32 4096, 4096
          %186 = vsyncadd [#allocation9], %s185
          %s187 = sshll.u32 [#allocation8], 4
          %s188 = int_to_ptr.vmem [resolvable:$true] %s187
          %193 = dma.hbm_to_vmem [thread:$0]  %s2, 4096, %s188, [#allocation9], 256, 256, 16
        $region20: #{tpu_custom_call.1} parent=11 // pred_fallthru
          _
        // Predicated region
        $region21: #{tpu_custom_call.1} parent=11 // pred_check
          %p194 = pneg %p85
        $region22: #{tpu_custom_call.1} parent=11 // pred_check_branch
          %196 = sbr.rel (%p194) target = $region24
        $region23: #{tpu_custom_call.1} parent=11 // pred_region
          %s198 = ssub.s32 32, 32
          %199 = vsyncadd [#allocation9], %s198
          %s201 = sshll.u32 [#allocation10], 4
          %s202 = int_to_ptr.vmem [resolvable:$true] %s201
          %204 = dma.hbm_to_vmem [thread:$0]  %s3, 32, %s202, [#allocation9]
        $region24: #{tpu_custom_call.1} parent=11 // pred_fallthru
          _
        // Predicated region
        $region25: #{tpu_custom_call.1} parent=11 // pred_check
          %p205 = pneg %p106
        $region26: #{tpu_custom_call.1} parent=11 // pred_check_branch
          %207 = sbr.rel (%p205) target = $region28
        $region27: #{tpu_custom_call.1} parent=11 // pred_region
          %s209 = ssub.s32 4096, 4096
          %210 = vsyncadd [#allocation12], %s209
          %s211 = sshll.u32 [#allocation11], 4
          %s212 = int_to_ptr.vmem [resolvable:$true] %s211
          %217 = dma.hbm_to_vmem [thread:$0]  %s4, 4096, %s212, [#allocation12], 128, 128, 8
        $region28: #{tpu_custom_call.1} parent=11 // pred_fallthru
          _
        // Predicated region
        $region29: #{tpu_custom_call.1} parent=11 // pred_check
          %p218 = pneg %p127
        $region30: #{tpu_custom_call.1} parent=11 // pred_check_branch
          %220 = sbr.rel (%p218) target = $region32
        $region31: #{tpu_custom_call.1} parent=11 // pred_region
          %s222 = ssub.s32 16, 16
          %223 = vsyncadd [#allocation12], %s222
          %s225 = sshll.u32 [#allocation13], 4
          %s226 = int_to_ptr.vmem [resolvable:$true] %s225
          %228 = dma.hbm_to_vmem [thread:$0]  %s5, 16, %s226, [#allocation12]
        $region32: #{tpu_custom_call.1} parent=11 // pred_fallthru
          _
      $region12: #{tpu_custom_call.1} parent=5 // pred_fallthru
        _
      %p229 = scmp.lt.s32.totalorder %s22, 2
      // Predicated region
      $region33: #{tpu_custom_call.1} parent=5 // pred_check
        %p230 = pneg %p229
      $region34: #{tpu_custom_call.1} parent=5 // pred_check_branch
        %232 = sbr.rel (%p230) target = $region36
      $region35: #{tpu_custom_call.1} parent=5 // pred_region
        _
      $region36: #{tpu_custom_call.1} parent=5 // pred_fallthru
        _
      %p233 = scmp.le.s32.totalorder 1, %s22
      %p234 = scmp.lt.s32.totalorder %s22, 3
      %p235 = pnand %p233, %p234
      %p236 = pneg %p235
      // Predicated region
      $region37: #{tpu_custom_call.1} parent=5 // pred_check
        _
      $region38: #{tpu_custom_call.1} parent=5 // pred_check_branch
        %238 = sbr.rel (%p235) target = $region40
      $region39: #{tpu_custom_call.1} parent=5 // pred_region
        %s239 = ssub.s32 %s22, 1
        // Predicated region
        $region41: #{tpu_custom_call.1} parent=39 // pred_check
          %p240 = pneg %p43
        $region42: #{tpu_custom_call.1} parent=39 // pred_check_branch
          %242 = sbr.rel (%p240) target = $region44
        $region43: #{tpu_custom_call.1} parent=39 // pred_region
          %243 = dma.done [#allocation6], 160000
        $region44: #{tpu_custom_call.1} parent=39 // pred_fallthru
          _
        // Predicated region
        $region45: #{tpu_custom_call.1} parent=39 // pred_check
          %p244 = pneg %p64
        $region46: #{tpu_custom_call.1} parent=39 // pred_check_branch
          %246 = sbr.rel (%p244) target = $region48
        $region47: #{tpu_custom_call.1} parent=39 // pred_region
          %247 = dma.done [#allocation9], 4096
        $region48: #{tpu_custom_call.1} parent=39 // pred_fallthru
          _
        // Predicated region
        $region49: #{tpu_custom_call.1} parent=39 // pred_check
          %p248 = pneg %p85
        $region50: #{tpu_custom_call.1} parent=39 // pred_check_branch
          %250 = sbr.rel (%p248) target = $region52
        $region51: #{tpu_custom_call.1} parent=39 // pred_region
          %251 = dma.done [#allocation9], 32
        $region52: #{tpu_custom_call.1} parent=39 // pred_fallthru
          _
        // Predicated region
        $region53: #{tpu_custom_call.1} parent=39 // pred_check
          %p252 = pneg %p106
        $region54: #{tpu_custom_call.1} parent=39 // pred_check_branch
          %254 = sbr.rel (%p252) target = $region56
        $region55: #{tpu_custom_call.1} parent=39 // pred_region
          %255 = dma.done [#allocation12], 4096
        $region56: #{tpu_custom_call.1} parent=39 // pred_fallthru
          _
        // Predicated region
        $region57: #{tpu_custom_call.1} parent=39 // pred_check
          %p256 = pneg %p127
        $region58: #{tpu_custom_call.1} parent=39 // pred_check_branch
          %258 = sbr.rel (%p256) target = $region60
        $region59: #{tpu_custom_call.1} parent=39 // pred_region
          %259 = dma.done [#allocation12], 16
        $region60: #{tpu_custom_call.1} parent=39 // pred_fallthru
          _
        %p260 = pneg %p43
        %p261 = pneg %p40
        %p262 = pneg %p64
        %p263 = pneg %p61
        %p264 = pneg %p85
        %p265 = pneg %p82
        %p266 = pneg %p106
        %p267 = pneg %p103
        %p268 = pneg %p127
        %p269 = pneg %p124
        %p270 = pneg %p153
        %p271 = pneg %p150
        %s272 = sand.u32 %s140, 1
        %s273 = scalar_lea.sflag [#allocation7], %s272
        %s274 = sand.u32 %s140, 1
        %s275 = smul.addr %s274, 8
        %s276 = scalar_lea.vmem [#allocation14], %s275
        %s277 = smul.u32 %s27, 8
        loop: start=0, step=1, limit=8
        $region61: #{tpu_custom_call.1} parent=39 // loop_pre_header
          _
        $region62: #{tpu_custom_call.1} parent=39 // loop_header
          %s279 = sphi 0, %s283
          %p280 = scmp.ge.s32.totalorder %s279, 8
        $region63: #{tpu_custom_call.1} parent=39 // loop_header_branch
          %282 = sbr.rel (%p280) target = $region67
        $region64: #{tpu_custom_call.1} parent=39 // loop_body
          %s284 = sadd.s32 %s277, %s279
          %s285 = sld [smem:[#allocation4 + %s284]]
          %s286 = scalar_lea.vmem [#allocation5], %s285
          %v287 = vld [vmem:[%s286] sm:$0x1]
          %s288 = scalar_lea.vmem [#allocation2], %s279
          %289 = vst [vmem:[%s288] sm:$0x1] %v287
        $region65: #{tpu_custom_call.1} parent=39 // loop_footer
          %s283 = sadd.s32 1, %s279
        $region66: #{tpu_custom_call.1} parent=39 // loop_footer_branch
          %278 = sbr.rel target = $region62
        $region67: #{tpu_custom_call.1} parent=39 // loop_exit
          _
        %v290 = vld [vmem:[#allocation2] sm:$0xff]
        %v291 = vld [vmem:[#allocation8] sm:$0xff]
        %v292 = vld [vmem:[#allocation8 + $0x8] sm:$0xff]
        %v293 = vld [vmem:[#allocation8 + $0x10] sm:$0xff]
        %v294 = vld [vmem:[#allocation8 + $0x18] sm:$0xff]
        %v295 = vld [vmem:[#allocation8 + $0x20] sm:$0xff]
        %v296 = vld [vmem:[#allocation8 + $0x28] sm:$0xff]
        %v297 = vld [vmem:[#allocation8 + $0x30] sm:$0xff]
        %v298 = vld [vmem:[#allocation8 + $0x38] sm:$0xff]
        %v299 = vld [vmem:[#allocation8 + $0x40] sm:$0xff]
        %v300 = vld [vmem:[#allocation8 + $0x48] sm:$0xff]
        %v301 = vld [vmem:[#allocation8 + $0x50] sm:$0xff]
        %v302 = vld [vmem:[#allocation8 + $0x58] sm:$0xff]
        %v303 = vld [vmem:[#allocation8 + $0x60] sm:$0xff]
        %v304 = vld [vmem:[#allocation8 + $0x68] sm:$0xff]
        %v305 = vld [vmem:[#allocation8 + $0x70] sm:$0xff]
        %v306 = vld [vmem:[#allocation8 + $0x78] sm:$0xff]
        %v307 = vld [vmem:[#allocation8 + $0x80] sm:$0xff]
        %v308 = vld [vmem:[#allocation8 + $0x88] sm:$0xff]
        %v309 = vld [vmem:[#allocation8 + $0x90] sm:$0xff]
        %v310 = vld [vmem:[#allocation8 + $0x98] sm:$0xff]
        %v311 = vld [vmem:[#allocation8 + $0xa0] sm:$0xff]
        %v312 = vld [vmem:[#allocation8 + $0xa8] sm:$0xff]
        %v313 = vld [vmem:[#allocation8 + $0xb0] sm:$0xff]
        %v314 = vld [vmem:[#allocation8 + $0xb8] sm:$0xff]
        %v315 = vld [vmem:[#allocation8 + $0xc0] sm:$0xff]
        %v316 = vld [vmem:[#allocation8 + $0xc8] sm:$0xff]
        %v317 = vld [vmem:[#allocation8 + $0xd0] sm:$0xff]
        %v318 = vld [vmem:[#allocation8 + $0xd8] sm:$0xff]
        %v319 = vld [vmem:[#allocation8 + $0xe0] sm:$0xff]
        %v320 = vld [vmem:[#allocation8 + $0xe8] sm:$0xff]
        %v321 = vld [vmem:[#allocation8 + $0xf0] sm:$0xff]
        %v322 = vld [vmem:[#allocation8 + $0xf8] sm:$0xff]
        %v323 = vld [vmem:[#allocation10] sm:$0x3]
        %v325 = vlaneseq
        %v326 = vshrl.u32 %v325, 7
        %v327 = vsub.s32 0, %v326
        %v328 = vrot.slane %v323, %v327
        %v329 = vlaneseq
        %v330 = vshrl.u32 %v329, 7
        %v331 = vsub.s32 1, %v330
        %v332 = vrot.slane %v323, %v331
        %335 = vmatprep.subr.mxu0 %v322
        %336 = vmatpush1.msra.mxu0 %v321
        %337 = vmatprep.subr.mxu0 %v320
        %338 = vmatpush1.msra.mxu0 %v319
        %339 = vmatprep.subr.mxu0 %v318
        %340 = vmatpush1.msra.mxu0 %v317
        %341 = vmatprep.subr.mxu0 %v316
        %342 = vmatpush1.msra.mxu0 %v315
        %343 = vmatprep.subr.mxu0 %v314
        %344 = vmatpush1.msra.mxu0 %v313
        %345 = vmatprep.subr.mxu0 %v312
        %346 = vmatpush1.msra.mxu0 %v311
        %347 = vmatprep.subr.mxu0 %v310
        %348 = vmatpush1.msra.mxu0 %v309
        %349 = vmatprep.subr.mxu0 %v308
        %350 = vmatpush1.msra.mxu0 %v307
        %351 = vmatprep.subr.mxu0 %v306
        %352 = vmatpush1.msra.mxu0 %v305
        %353 = vmatprep.subr.mxu0 %v304
        %354 = vmatpush1.msra.mxu0 %v303
        %355 = vmatprep.subr.mxu0 %v302
        %356 = vmatpush1.msra.mxu0 %v301
        %357 = vmatprep.subr.mxu0 %v300
        %358 = vmatpush1.msra.mxu0 %v299
        %359 = vmatprep.subr.mxu0 %v298
        %360 = vmatpush1.msra.mxu0 %v297
        %361 = vmatprep.subr.mxu0 %v296
        %362 = vmatpush1.msra.mxu0 %v295
        %363 = vmatprep.subr.mxu0 %v294
        %364 = vmatpush1.msra.mxu0 %v293
        %365 = vmatprep.subr.mxu0 %v292
        %366 = vmatpush1.msra.mxu0 %v291
        %367 = vmatprep.subr.mxu0 0.0
        %368 = vmatpush2.msra.mxu0 0.0
        %369 = vmatprep.subr.mxu0 0.0
        %370 = vmatpush2.msra.mxu0 0.0
        %371 = vmatprep.subr.mxu0 0.0
        %372 = vmatpush2.msra.mxu0 0.0
        %373 = vmatprep.subr.mxu0 0.0
        %374 = vmatpush2.msra.mxu0 0.0
        %375 = vmatprep.subr.mxu0 0.0
        %376 = vmatpush2.msra.mxu0 0.0
        %377 = vmatprep.subr.mxu0 0.0
        %378 = vmatpush2.msra.mxu0 0.0
        %379 = vmatprep.subr.mxu0 0.0
        %380 = vmatpush2.msra.mxu0 0.0
        %381 = vmatprep.subr.mxu0 0.0
        %382 = vmatpush2.msra.mxu0 0.0
        %383 = vmatprep.subr.mxu0 0.0
        %384 = vmatpush2.msra.mxu0 0.0
        %385 = vmatprep.subr.mxu0 0.0
        %386 = vmatpush2.msra.mxu0 0.0
        %387 = vmatprep.subr.mxu0 0.0
        %388 = vmatpush2.msra.mxu0 0.0
        %389 = vmatprep.subr.mxu0 0.0
        %390 = vmatpush2.msra.mxu0 0.0
        %391 = vmatprep.subr.mxu0 0.0
        %392 = vmatpush2.msra.mxu0 0.0
        %393 = vmatprep.subr.mxu0 0.0
        %394 = vmatpush2.msra.mxu0 0.0
        %395 = vmatprep.subr.mxu0 0.0
        %396 = vmatpush2.msra.mxu0 0.0
        %397 = vmatprep.subr.mxu0 0.0
        %398 = vmatpush2.msra.mxu0 0.0
        %399 = vmatprep.mubr.f32.mxu0 0.0
        %400 = vmatmul.mubr.f32.gmra.mxu0 %v290
        %v401 = vpop.f32.mrf.mxu0
        %v402 = vadd.f32 %v328, %v401
        %v403 = vpop.f32.mrf.mxu0
        %v404 = vadd.f32 %v332, %v403
        %405 = vdwg.mxu0
        %v406 = vmax.f32 %v402, 0.0
        %v407 = vmax.f32 %v404, 0.0
        %v408 = vld [vmem:[#allocation11] sm:$0xff]
        %v409 = vld [vmem:[#allocation11 + $0x8] sm:$0xff]
        %v410 = vld [vmem:[#allocation11 + $0x10] sm:$0xff]
        %v411 = vld [vmem:[#allocation11 + $0x18] sm:$0xff]
        %v412 = vld [vmem:[#allocation11 + $0x20] sm:$0xff]
        %v413 = vld [vmem:[#allocation11 + $0x28] sm:$0xff]
        %v414 = vld [vmem:[#allocation11 + $0x30] sm:$0xff]
        %v415 = vld [vmem:[#allocation11 + $0x38] sm:$0xff]
        %v416 = vld [vmem:[#allocation11 + $0x40] sm:$0xff]
        %v417 = vld [vmem:[#allocation11 + $0x48] sm:$0xff]
        %v418 = vld [vmem:[#allocation11 + $0x50] sm:$0xff]
        %v419 = vld [vmem:[#allocation11 + $0x58] sm:$0xff]
        %v420 = vld [vmem:[#allocation11 + $0x60] sm:$0xff]
        %v421 = vld [vmem:[#allocation11 + $0x68] sm:$0xff]
        %v422 = vld [vmem:[#allocation11 + $0x70] sm:$0xff]
        %v423 = vld [vmem:[#allocation11 + $0x78] sm:$0xff]
        %v424 = vld [vmem:[#allocation11 + $0x80] sm:$0xff]
        %v425 = vld [vmem:[#allocation11 + $0x88] sm:$0xff]
        %v426 = vld [vmem:[#allocation11 + $0x90] sm:$0xff]
        %v427 = vld [vmem:[#allocation11 + $0x98] sm:$0xff]
        %v428 = vld [vmem:[#allocation11 + $0xa0] sm:$0xff]
        %v429 = vld [vmem:[#allocation11 + $0xa8] sm:$0xff]
        %v430 = vld [vmem:[#allocation11 + $0xb0] sm:$0xff]
        %v431 = vld [vmem:[#allocation11 + $0xb8] sm:$0xff]
        %v432 = vld [vmem:[#allocation11 + $0xc0] sm:$0xff]
        %v433 = vld [vmem:[#allocation11 + $0xc8] sm:$0xff]
        %v434 = vld [vmem:[#allocation11 + $0xd0] sm:$0xff]
        %v435 = vld [vmem:[#allocation11 + $0xd8] sm:$0xff]
        %v436 = vld [vmem:[#allocation11 + $0xe0] sm:$0xff]
        %v437 = vld [vmem:[#allocation11 + $0xe8] sm:$0xff]
        %v438 = vld [vmem:[#allocation11 + $0xf0] sm:$0xff]
        %v439 = vld [vmem:[#allocation11 + $0xf8] sm:$0xff]
        %v440 = vld [vmem:[#allocation13] sm:$0x1]
        %v442 = vlaneseq
        %v443 = vshrl.u32 %v442, 7
        %v444 = vsub.s32 0, %v443
        %v445 = vrot.slane %v440, %v444
        %447 = vmatprep.subr.mxu0 0.0
        %448 = vmatpush1.msra.mxu0 %v423
        %449 = vmatprep.subr.mxu0 0.0
        %450 = vmatpush1.msra.mxu0 %v422
        %451 = vmatprep.subr.mxu0 0.0
        %452 = vmatpush1.msra.mxu0 %v421
        %453 = vmatprep.subr.mxu0 0.0
        %454 = vmatpush1.msra.mxu0 %v420
        %455 = vmatprep.subr.mxu0 0.0
        %456 = vmatpush1.msra.mxu0 %v419
        %457 = vmatprep.subr.mxu0 0.0
        %458 = vmatpush1.msra.mxu0 %v418
        %459 = vmatprep.subr.mxu0 0.0
        %460 = vmatpush1.msra.mxu0 %v417
        %461 = vmatprep.subr.mxu0 0.0
        %462 = vmatpush1.msra.mxu0 %v416
        %463 = vmatprep.subr.mxu0 0.0
        %464 = vmatpush1.msra.mxu0 %v415
        %465 = vmatprep.subr.mxu0 0.0
        %466 = vmatpush1.msra.mxu0 %v414
        %467 = vmatprep.subr.mxu0 0.0
        %468 = vmatpush1.msra.mxu0 %v413
        %469 = vmatprep.subr.mxu0 0.0
        %470 = vmatpush1.msra.mxu0 %v412
        %471 = vmatprep.subr.mxu0 0.0
        %472 = vmatpush1.msra.mxu0 %v411
        %473 = vmatprep.subr.mxu0 0.0
        %474 = vmatpush1.msra.mxu0 %v410
        %475 = vmatprep.subr.mxu0 0.0
        %476 = vmatpush1.msra.mxu0 %v409
        %477 = vmatprep.subr.mxu0 0.0
        %478 = vmatpush1.msra.mxu0 %v408
        %479 = vmatprep.subr.mxu0 0.0
        %480 = vmatpush2.msra.mxu0 %v439
        %481 = vmatprep.subr.mxu0 0.0
        %482 = vmatpush2.msra.mxu0 %v438
        %483 = vmatprep.subr.mxu0 0.0
        %484 = vmatpush2.msra.mxu0 %v437
        %485 = vmatprep.subr.mxu0 0.0
        %486 = vmatpush2.msra.mxu0 %v436
        %487 = vmatprep.subr.mxu0 0.0
        %488 = vmatpush2.msra.mxu0 %v435
        %489 = vmatprep.subr.mxu0 0.0
        %490 = vmatpush2.msra.mxu0 %v434
        %491 = vmatprep.subr.mxu0 0.0
        %492 = vmatpush2.msra.mxu0 %v433
        %493 = vmatprep.subr.mxu0 0.0
        %494 = vmatpush2.msra.mxu0 %v432
        %495 = vmatprep.subr.mxu0 0.0
        %496 = vmatpush2.msra.mxu0 %v431
        %497 = vmatprep.subr.mxu0 0.0
        %498 = vmatpush2.msra.mxu0 %v430
        %499 = vmatprep.subr.mxu0 0.0
        %500 = vmatpush2.msra.mxu0 %v429
        %501 = vmatprep.subr.mxu0 0.0
        %502 = vmatpush2.msra.mxu0 %v428
        %503 = vmatprep.subr.mxu0 0.0
        %504 = vmatpush2.msra.mxu0 %v427
        %505 = vmatprep.subr.mxu0 0.0
        %506 = vmatpush2.msra.mxu0 %v426
        %507 = vmatprep.subr.mxu0 0.0
        %508 = vmatpush2.msra.mxu0 %v425
        %509 = vmatprep.subr.mxu0 0.0
        %510 = vmatpush2.msra.mxu0 %v424
        %511 = vmatprep.mubr.f32.mxu0 %v407
        %512 = vmatmul.mubr.f32.gmra.mxu0 %v406
        %v513 = vpop.f32.mrf.mxu0
        %v514 = vadd.f32 %v445, %v513
        %v515 = vpop.f32.mrf.mxu0
        %516 = vdwg.mxu0
        %v517 = vxor.u32 %v514, 2147483648
        %v518 = vmul.f32 %v517, 1.442695
        %v519 = vpow.pop %v518
        %v520 = vadd.f32 %v519, 1.0
        %v521 = vrcp.pop %v520
        %v522 = vmul.f32 1.0, %v521
        %523 = vst [vmem:[%s276] sm:$0xff] %v522
        %s524 = sand.u32 %s140, 1
        %s525 = scalar_lea.sflag [#allocation7], %s524
        %s526 = sand.u32 %s140, 1
        %s527 = smul.addr %s526, 8
        %s528 = scalar_lea.vmem [#allocation14], %s527
        // Predicated region
        $region68: #{tpu_custom_call.1} parent=39 // pred_check
          %p529 = pneg %p150
        $region69: #{tpu_custom_call.1} parent=39 // pred_check_branch
          %531 = sbr.rel (%p529) target = $region71
        $region70: #{tpu_custom_call.1} parent=39 // pred_region
          %s533 = ssub.s32 128, 128
          %534 = vsyncadd %s525, %s533
          %s535 = smul.addr %s27, 128
          %s536 = scalar_lea.hbm %s6, %s535
          %s538 = sshll.u32 %s528, 4
          %s539 = int_to_ptr.vmem [resolvable:$true] %s538
          %541 = dma.vmem_to_hbm [thread:$0]  %s539, 128, %s536, %s525
        $region71: #{tpu_custom_call.1} parent=39 // pred_fallthru
          _
      $region40: #{tpu_custom_call.1} parent=5 // pred_fallthru
        _
      %p542 = scmp.le.s32.totalorder 2, %s22
      // Predicated region
      $region72: #{tpu_custom_call.1} parent=5 // pred_check
        %p543 = pneg %p542
      $region73: #{tpu_custom_call.1} parent=5 // pred_check_branch
        %545 = sbr.rel (%p543) target = $region75
      $region74: #{tpu_custom_call.1} parent=5 // pred_region
        %s546 = ssub.s32 %s22, 2
        // Predicated region
        $region76: #{tpu_custom_call.1} parent=74 // pred_check
          %p547 = pneg %p156
        $region77: #{tpu_custom_call.1} parent=74 // pred_check_branch
          %549 = sbr.rel (%p547) target = $region79
        $region78: #{tpu_custom_call.1} parent=74 // pred_region
          %s550 = sand.u32 %s141, 1
          %s551 = scalar_lea.sflag [#allocation7], %s550
          %s552 = sand.u32 %s141, 1
          %s553 = smul.addr %s552, 8
          %s554 = scalar_lea.vmem [#allocation14], %s553
          %555 = dma.done %s551, 128
        $region79: #{tpu_custom_call.1} parent=74 // pred_fallthru
          _
      $region75: #{tpu_custom_call.1} parent=5 // pred_fallthru
        _
    $region6: #{tpu_custom_call.1} parent=1 // loop_footer
      %s26 = sadd.s32 1, %s22
    $region7: #{tpu_custom_call.1} parent=1 // loop_footer_branch
      %21 = sbr.rel target = $region3
    $region8: #{tpu_custom_call.1} parent=1 // loop_exit
      _
    %556 = vsyncpa [#allocation6], 1
    %s557 = scalar_lea.sflag [#allocation6], 1
    %558 = vsyncpa %s557, 1
    %559 = vsyncpa [#allocation9], 1
    %560 = vsyncpa [#allocation12], 1
    %561 = vsyncpa [#allocation7], 1
    %s562 = scalar_lea.sflag [#allocation7], 1
    %563 = vsyncpa %s562, 1

// kernel: tpu_custom_call.1
$region0: #{tpu_custom_call.1}
  #allocation0 [shape = 'u32[]', space=smem, size = 0x4, offset = 0x4, fixed_abs, tag = 'smem constant byte address 0x4 - core index']
  #allocation1 [shape = 'u32[144,128]{1,0:T(1,128)}', space=vmem, size = 0x12000, scoped, tag = 'internal scratch']
  #allocation2 [shape = 'f32[8,128]{1,0:T(8,128)}', space=vmem, size = 0x1000, scoped, tag = 'scratch operand']
  #allocation3 [shape = 's32[1]{0}', space=sflag, size = 0x4, scoped, tag = 'scoped memory for tpu_custom_call.1']
  #allocation4 [shape = 'u8[512]{0}', space=smem, size = 0x200, scoped, tag = 'prefetched SMEM operand 0']
  %s0 = inlined_call_operand.hbm [shape: s32[16], index: 0, kind: input, shape index: {}]
  %s1 = inlined_call_operand.hbm [shape: f32[10000,128], index: 1, kind: input, shape index: {}]
  %s2 = inlined_call_operand.hbm [shape: f32[128,256], index: 2, kind: input, shape index: {}]
  %s3 = inlined_call_operand.hbm [shape: f32[1,256], index: 3, kind: input, shape index: {}]
  %s4 = inlined_call_operand.hbm [shape: f32[256,128], index: 4, kind: input, shape index: {}]
  %s5 = inlined_call_operand.hbm [shape: f32[1,128], index: 5, kind: input, shape index: {}]
  %s6 = inlined_call_operand.hbm [shape: f32[16,128], index: 6, kind: output, shape index: {}]
  %s7 = sld [smem:[#allocation0]]
  $region80: #{tpu_custom_call.1} parent=0
    _
  %s9 = ssub.s32 1, %s7
  %s10 = scalar_select 0, %s9, %s7
  %12 = dma.hbm_to_smem %s0, 16, [#allocation4], [#allocation3]
  %13 = dma.done [#allocation3], 16
  %14 = sfence
  $region1: #{tpu_custom_call.1} parent=0
    #allocation5 [shape = 'u8[5120000]{0}', space=vmem, size = 0x4e2000, scoped, tag = 'input window, operand 1, single buffered']
    #allocation6 [shape = 's32[2]{0}', space=sflag, size = 0x8, scoped, tag = 'scoped memory for tpu_custom_call.1']
    #allocation7 [shape = 's32[2]{0}', space=sflag, size = 0x8, scoped, tag = 'scoped memory for tpu_custom_call.1']
    #allocation8 [shape = 'u8[131072]{0}', space=vmem, size = 0x20000, scoped, tag = 'input window, operand 2, single buffered']
    #allocation9 [shape = 's32[1]{0}', space=sflag, size = 0x4, scoped, tag = 'scoped memory for tpu_custom_call.1']
    #allocation10 [shape = 'u8[1024]{0}', space=vmem, size = 0x400, scoped, tag = 'input window, operand 3, single buffered']
    #allocation11 [shape = 'u8[131072]{0}', space=vmem, size = 0x20000, scoped, tag = 'input window, operand 4, single buffered']
    #allocation12 [shape = 's32[1]{0}', space=sflag, size = 0x4, scoped, tag = 'scoped memory for tpu_custom_call.1']
    #allocation13 [shape = 'u8[512]{0}', space=vmem, size = 0x400, scoped, tag = 'input window, operand 5, single buffered']
    #allocation14 [shape = 'u8[8192]{0}', space=vmem, size = 0x2000, scoped, tag = 'output window, operand 0']
    %15 = vsyncpa [#allocation6], 0
    %16 = vsyncpa [#allocation9], 0
    %17 = vsyncpa [#allocation12], 0
    %18 = vsyncpa [#allocation7], 0
    %s19 = scalar_lea.sflag [#allocation7], 1
    %20 = vsyncpa %s19, 0
    loop: start=0, step=1, limit=4
    $region2: #{tpu_custom_call.1} parent=1 // loop_pre_header
      _
    $region3: #{tpu_custom_call.1} parent=1 // loop_header
      %s22 = sphi 0, %s26
      %p23 = scmp.ge.s32.totalorder %s22, 4
      %s30 = sphi 0, %s30
      %s32 = sphi 0, %s30
      %s33 = sphi 0, %s32
      %s47 = sphi 0, %s33
      %s51 = sphi 0, %s51
      %s53 = sphi 0, %s51
      %s54 = sphi 0, %s53
      %s68 = sphi 0, %s54
      %s72 = sphi 0, %s72
      %s74 = sphi 0, %s72
      %s75 = sphi 0, %s74
      %s89 = sphi 0, %s75
      %s93 = sphi 0, %s93
      %s95 = sphi 0, %s93
      %s96 = sphi 0, %s95
      %s110 = sphi 0, %s96
      %s114 = sphi 0, %s114
      %s116 = sphi 0, %s114
      %s117 = sphi 0, %s116
      %s131 = sphi 0, %s117
      %s137 = sphi 0, %s139
      %s140 = sphi 0, %s137
      %s141 = sphi 0, %s140
      %s157 = sphi 0, %s141
    $region4: #{tpu_custom_call.1} parent=1 // loop_header_branch
      %25 = sbr.rel (%p23) target = $region8
    $region5: #{tpu_custom_call.1} parent=1 // loop_body
      %s27 = ssub.s32 %s22, 1
      %s28 = ssub.s32 %s22, 2
      %s29 = sadd.s32 %s22, 1
      %s31 = sadd.s32 %s30, 1
      %p34 = scmp.eq.s32.totalorder %s22, 1
      %p35 = scmp.ne.s32.totalorder %s30, %s32
      %p36 = scmp.eq.s32.totalorder %s22, 0
      %p37 = por %p35, %p36
      %p38 = scmp.ne.s32.totalorder %s30, %s32
      %p39 = scmp.eq.s32.totalorder %s27, 1
      %p40 = por %p38, %p39
      %p41 = scmp.ne.s32.totalorder %s32, %s33
      %p42 = scmp.eq.s32.totalorder %s27, 0
      %p43 = por %p41, %p42
      %p44 = scmp.ne.s32.totalorder %s32, %s33
      %p45 = scmp.eq.s32.totalorder %s28, 1
      %p46 = por %p44, %p45
      %p48 = scmp.ne.s32.totalorder %s33, %s47
      %p49 = scmp.eq.s32.totalorder %s28, 0
      %p50 = por %p48, %p49
      %s52 = sadd.s32 %s51, 1
      %p55 = scmp.eq.s32.totalorder %s22, 1
      %p56 = scmp.ne.s32.totalorder %s51, %s53
      %p57 = scmp.eq.s32.totalorder %s22, 0
      %p58 = por %p56, %p57
      %p59 = scmp.ne.s32.totalorder %s51, %s53
      %p60 = scmp.eq.s32.totalorder %s27, 1
      %p61 = por %p59, %p60
      %p62 = scmp.ne.s32.totalorder %s53, %s54
      %p63 = scmp.eq.s32.totalorder %s27, 0
      %p64 = por %p62, %p63
      %p65 = scmp.ne.s32.totalorder %s53, %s54
      %p66 = scmp.eq.s32.totalorder %s28, 1
      %p67 = por %p65, %p66
      %p69 = scmp.ne.s32.totalorder %s54, %s68
      %p70 = scmp.eq.s32.totalorder %s28, 0
      %p71 = por %p69, %p70
      %s73 = sadd.s32 %s72, 1
      %p76 = scmp.eq.s32.totalorder %s22, 1
      %p77 = scmp.ne.s32.totalorder %s72, %s74
      %p78 = scmp.eq.s32.totalorder %s22, 0
      %p79 = por %p77, %p78
      %p80 = scmp.ne.s32.totalorder %s72, %s74
      %p81 = scmp.eq.s32.totalorder %s27, 1
      %p82 = por %p80, %p81
      %p83 = scmp.ne.s32.totalorder %s74, %s75
      %p84 = scmp.eq.s32.totalorder %s27, 0
      %p85 = por %p83, %p84
      %p86 = scmp.ne.s32.totalorder %s74, %s75
      %p87 = scmp.eq.s32.totalorder %s28, 1
      %p88 = por %p86, %p87
      %p90 = scmp.ne.s32.totalorder %s75, %s89
      %p91 = scmp.eq.s32.totalorder %s28, 0
      %p92 = por %p90, %p91
      %s94 = sadd.s32 %s93, 1
      %p97 = scmp.eq.s32.totalorder %s22, 1
      %p98 = scmp.ne.s32.totalorder %s93, %s95
      %p99 = scmp.eq.s32.totalorder %s22, 0
      %p100 = por %p98, %p99
      %p101 = scmp.ne.s32.totalorder %s93, %s95
      %p102 = scmp.eq.s32.totalorder %s27, 1
      %p103 = por %p101, %p102
      %p104 = scmp.ne.s32.totalorder %s95, %s96
      %p105 = scmp.eq.s32.totalorder %s27, 0
      %p106 = por %p104, %p105
      %p107 = scmp.ne.s32.totalorder %s95, %s96
      %p108 = scmp.eq.s32.totalorder %s28, 1
      %p109 = por %p107, %p108
      %p111 = scmp.ne.s32.totalorder %s96, %s110
      %p112 = scmp.eq.s32.totalorder %s28, 0
      %p113 = por %p111, %p112
      %s115 = sadd.s32 %s114, 1
      %p118 = scmp.eq.s32.totalorder %s22, 1
      %p119 = scmp.ne.s32.totalorder %s114, %s116
      %p120 = scmp.eq.s32.totalorder %s22, 0
      %p121 = por %p119, %p120
      %p122 = scmp.ne.s32.totalorder %s114, %s116
      %p123 = scmp.eq.s32.totalorder %s27, 1
      %p124 = por %p122, %p123
      %p125 = scmp.ne.s32.totalorder %s116, %s117
      %p126 = scmp.eq.s32.totalorder %s27, 0
      %p127 = por %p125, %p126
      %p128 = scmp.ne.s32.totalorder %s116, %s117
      %p129 = scmp.eq.s32.totalorder %s28, 1
      %p130 = por %p128, %p129
      %p132 = scmp.ne.s32.totalorder %s117, %s131
      %p133 = scmp.eq.s32.totalorder %s28, 0
      %p134 = por %p132, %p133
      %s135 = ssub.s32 %s22, %s29
      %p136 = scmp.eq.s32.totalorder %s135, 0
      %s138 = sadd.s32 %s137, 1
      %s139 = scalar_select %p136, %s137, %s138
      %p142 = pneg %p136
      %p143 = scmp.eq.s32.totalorder %s22, 1
      %p144 = por %p142, %p143
      %p145 = scmp.ne.s32.totalorder %s137, %s140
      %p146 = scmp.eq.s32.totalorder %s22, 0
      %p147 = por %p145, %p146
      %p148 = scmp.ne.s32.totalorder %s137, %s140
      %p149 = scmp.eq.s32.totalorder %s27, 1
      %p150 = por %p148, %p149
      %p151 = scmp.ne.s32.totalorder %s140, %s141
      %p152 = scmp.eq.s32.totalorder %s27, 0
      %p153 = por %p151, %p152
      %p154 = scmp.ne.s32.totalorder %s140, %s141
      %p155 = scmp.eq.s32.totalorder %s28, 1
      %p156 = por %p154, %p155
      %p158 = scmp.ne.s32.totalorder %s141, %s157
      %p159 = scmp.eq.s32.totalorder %s28, 0
      %p160 = por %p158, %p159
      %p161 = scmp.le.s32.totalorder 1, %s22
      %p162 = scmp.lt.s32.totalorder %s22, 3
      %p163 = pnand %p161, %p162
      %p164 = pneg %p163
      // Predicated region
      $region9: #{tpu_custom_call.1} parent=5 // pred_check
        _
      $region10: #{tpu_custom_call.1} parent=5 // pred_check_branch
        %166 = sbr.rel (%p163) target = $region12
      $region11: #{tpu_custom_call.1} parent=5 // pred_region
        %s167 = ssub.s32 %s22, 1
        // Predicated region
        $region13: #{tpu_custom_call.1} parent=11 // pred_check
          %p168 = pneg %p43
        $region14: #{tpu_custom_call.1} parent=11 // pred_check_branch
          %170 = sbr.rel (%p168) target = $region16
        $region15: #{tpu_custom_call.1} parent=11 // pred_region
          %s172 = ssub.s32 160000, 160000
          %173 = vsyncadd [#allocation6], %s172
          %s174 = sshll.u32 [#allocation5], 4
          %s175 = int_to_ptr.vmem [resolvable:$true] %s174
          %180 = dma.hbm_to_vmem [thread:$0]  %s1, 160000, %s175, [#allocation6], 128, 128, 8
        $region16: #{tpu_custom_call.1} parent=11 // pred_fallthru
          _
        // Predicated region
        $region17: #{tpu_custom_call.1} parent=11 // pred_check
          %p181 = pneg %p64
        $region18: #{tpu_custom_call.1} parent=11 // pred_check_branch
          %183 = sbr.rel (%p181) target = $region20
        $region19: #{tpu_custom_call.1} parent=11 // pred_region
          %s185 = ssub.s32 4096, 4096
          %186 = vsyncadd [#allocation9], %s185
          %s187 = sshll.u32 [#allocation8], 4
          %s188 = int_to_ptr.vmem [resolvable:$true] %s187
          %193 = dma.hbm_to_vmem [thread:$0]  %s2, 4096, %s188, [#allocation9], 256, 256, 16
        $region20: #{tpu_custom_call.1} parent=11 // pred_fallthru
          _
        // Predicated region
        $region21: #{tpu_custom_call.1} parent=11 // pred_check
          %p194 = pneg %p85
        $region22: #{tpu_custom_call.1} parent=11 // pred_check_branch
          %196 = sbr.rel (%p194) target = $region24
        $region23: #{tpu_custom_call.1} parent=11 // pred_region
          %s198 = ssub.s32 32, 32
          %199 = vsyncadd [#allocation9], %s198
          %s201 = sshll.u32 [#allocation10], 4
          %s202 = int_to_ptr.vmem [resolvable:$true] %s201
          %204 = dma.hbm_to_vmem [thread:$0]  %s3, 32, %s202, [#allocation9]
        $region24: #{tpu_custom_call.1} parent=11 // pred_fallthru
          _
        // Predicated region
        $region25: #{tpu_custom_call.1} parent=11 // pred_check
          %p205 = pneg %p106
        $region26: #{tpu_custom_call.1} parent=11 // pred_check_branch
          %207 = sbr.rel (%p205) target = $region28
        $region27: #{tpu_custom_call.1} parent=11 // pred_region
          %s209 = ssub.s32 4096, 4096
          %210 = vsyncadd [#allocation12], %s209
          %s211 = sshll.u32 [#allocation11], 4
          %s212 = int_to_ptr.vmem [resolvable:$true] %s211
          %217 = dma.hbm_to_vmem [thread:$0]  %s4, 4096, %s212, [#allocation12], 128, 128, 8
        $region28: #{tpu_custom_call.1} parent=11 // pred_fallthru
          _
        // Predicated region
        $region29: #{tpu_custom_call.1} parent=11 // pred_check
          %p218 = pneg %p127
        $region30: #{tpu_custom_call.1} parent=11 // pred_check_branch
          %220 = sbr.rel (%p218) target = $region32
        $region31: #{tpu_custom_call.1} parent=11 // pred_region
          %s222 = ssub.s32 16, 16
          %223 = vsyncadd [#allocation12], %s222
          %s225 = sshll.u32 [#allocation13], 4
          %s226 = int_to_ptr.vmem [resolvable:$true] %s225
          %228 = dma.hbm_to_vmem [thread:$0]  %s5, 16, %s226, [#allocation12]
        $region32: #{tpu_custom_call.1} parent=11 // pred_fallthru
          _
      $region12: #{tpu_custom_call.1} parent=5 // pred_fallthru
        _
      %p229 = scmp.lt.s32.totalorder %s22, 2
      // Predicated region
      $region33: #{tpu_custom_call.1} parent=5 // pred_check
        %p230 = pneg %p229
      $region34: #{tpu_custom_call.1} parent=5 // pred_check_branch
        %232 = sbr.rel (%p230) target = $region36
      $region35: #{tpu_custom_call.1} parent=5 // pred_region
        _
      $region36: #{tpu_custom_call.1} parent=5 // pred_fallthru
        _
      %p233 = scmp.le.s32.totalorder 1, %s22
      %p234 = scmp.lt.s32.totalorder %s22, 3
      %p235 = pnand %p233, %p234
      %p236 = pneg %p235
      // Predicated region
      $region37: #{tpu_custom_call.1} parent=5 // pred_check
        _
      $region38: #{tpu_custom_call.1} parent=5 // pred_check_branch
        %238 = sbr.rel (%p235) target = $region40
      $region39: #{tpu_custom_call.1} parent=5 // pred_region
        %s239 = ssub.s32 %s22, 1
        // Predicated region
        $region41: #{tpu_custom_call.1} parent=39 // pred_check
          %p240 = pneg %p43
        $region42: #{tpu_custom_call.1} parent=39 // pred_check_branch
          %242 = sbr.rel (%p240) target = $region44
        $region43: #{tpu_custom_call.1} parent=39 // pred_region
          %243 = dma.done [#allocation6], 160000
        $region44: #{tpu_custom_call.1} parent=39 // pred_fallthru
          _
        // Predicated region
        $region45: #{tpu_custom_call.1} parent=39 // pred_check
          %p244 = pneg %p64
        $region46: #{tpu_custom_call.1} parent=39 // pred_check_branch
          %246 = sbr.rel (%p244) target = $region48
        $region47: #{tpu_custom_call.1} parent=39 // pred_region
          %247 = dma.done [#allocation9], 4096
        $region48: #{tpu_custom_call.1} parent=39 // pred_fallthru
          _
        // Predicated region
        $region49: #{tpu_custom_call.1} parent=39 // pred_check
          %p248 = pneg %p85
        $region50: #{tpu_custom_call.1} parent=39 // pred_check_branch
          %250 = sbr.rel (%p248) target = $region52
        $region51: #{tpu_custom_call.1} parent=39 // pred_region
          %251 = dma.done [#allocation9], 32
        $region52: #{tpu_custom_call.1} parent=39 // pred_fallthru
          _
        // Predicated region
        $region53: #{tpu_custom_call.1} parent=39 // pred_check
          %p252 = pneg %p106
        $region54: #{tpu_custom_call.1} parent=39 // pred_check_branch
          %254 = sbr.rel (%p252) target = $region56
        $region55: #{tpu_custom_call.1} parent=39 // pred_region
          %255 = dma.done [#allocation12], 4096
        $region56: #{tpu_custom_call.1} parent=39 // pred_fallthru
          _
        // Predicated region
        $region57: #{tpu_custom_call.1} parent=39 // pred_check
          %p256 = pneg %p127
        $region58: #{tpu_custom_call.1} parent=39 // pred_check_branch
          %258 = sbr.rel (%p256) target = $region60
        $region59: #{tpu_custom_call.1} parent=39 // pred_region
          %259 = dma.done [#allocation12], 16
        $region60: #{tpu_custom_call.1} parent=39 // pred_fallthru
          _
        %p260 = pneg %p43
        %p261 = pneg %p40
        %p262 = pneg %p64
        %p263 = pneg %p61
        %p264 = pneg %p85
        %p265 = pneg %p82
        %p266 = pneg %p106
        %p267 = pneg %p103
        %p268 = pneg %p127
        %p269 = pneg %p124
        %p270 = pneg %p153
        %p271 = pneg %p150
        %s272 = sand.u32 %s140, 1
        %s273 = scalar_lea.sflag [#allocation7], %s272
        %s274 = sand.u32 %s140, 1
        %s275 = smul.addr %s274, 8
        %s276 = scalar_lea.vmem [#allocation14], %s275
        %s277 = smul.u32 %s27, 8
        loop: start=0, step=1, limit=8
        $region61: #{tpu_custom_call.1} parent=39 // loop_pre_header
          _
        $region62: #{tpu_custom_call.1} parent=39 // loop_header
          %s279 = sphi 0, %s283
          %p280 = scmp.ge.s32.totalorder %s279, 8
        $region63: #{tpu_custom_call.1} parent=39 // loop_header_branch
          %282 = sbr.rel (%p280) target = $region67
        $region64: #{tpu_custom_call.1} parent=39 // loop_body
          %s284 = sadd.s32 %s277, %s279
          %s285 = sld [smem:[#allocation4 + %s284]]
          %s286 = scalar_lea.vmem [#allocation5], %s285
          %v287 = vld [vmem:[%s286] sm:$0x1]
          %s288 = scalar_lea.vmem [#allocation2], %s279
          %289 = vst [vmem:[%s288] sm:$0x1] %v287
        $region65: #{tpu_custom_call.1} parent=39 // loop_footer
          %s283 = sadd.s32 1, %s279
        $region66: #{tpu_custom_call.1} parent=39 // loop_footer_branch
          %278 = sbr.rel target = $region62
        $region67: #{tpu_custom_call.1} parent=39 // loop_exit
          _
        %v290 = vld [vmem:[#allocation2] sm:$0xff]
        %v291 = vld [vmem:[#allocation8] sm:$0xff]
        %v292 = vld [vmem:[#allocation8 + $0x8] sm:$0xff]
        %v293 = vld [vmem:[#allocation8 + $0x10] sm:$0xff]
        %v294 = vld [vmem:[#allocation8 + $0x18] sm:$0xff]
        %v295 = vld [vmem:[#allocation8 + $0x20] sm:$0xff]
        %v296 = vld [vmem:[#allocation8 + $0x28] sm:$0xff]
        %v297 = vld [vmem:[#allocation8 + $0x30] sm:$0xff]
        %v298 = vld [vmem:[#allocation8 + $0x38] sm:$0xff]
        %v299 = vld [vmem:[#allocation8 + $0x40] sm:$0xff]
        %v300 = vld [vmem:[#allocation8 + $0x48] sm:$0xff]
        %v301 = vld [vmem:[#allocation8 + $0x50] sm:$0xff]
        %v302 = vld [vmem:[#allocation8 + $0x58] sm:$0xff]
        %v303 = vld [vmem:[#allocation8 + $0x60] sm:$0xff]
        %v304 = vld [vmem:[#allocation8 + $0x68] sm:$0xff]
        %v305 = vld [vmem:[#allocation8 + $0x70] sm:$0xff]
        %v306 = vld [vmem:[#allocation8 + $0x78] sm:$0xff]
        %v307 = vld [vmem:[#allocation8 + $0x80] sm:$0xff]
        %v308 = vld [vmem:[#allocation8 + $0x88] sm:$0xff]
        %v309 = vld [vmem:[#allocation8 + $0x90] sm:$0xff]
        %v310 = vld [vmem:[#allocation8 + $0x98] sm:$0xff]
        %v311 = vld [vmem:[#allocation8 + $0xa0] sm:$0xff]
        %v312 = vld [vmem:[#allocation8 + $0xa8] sm:$0xff]
        %v313 = vld [vmem:[#allocation8 + $0xb0] sm:$0xff]
        %v314 = vld [vmem:[#allocation8 + $0xb8] sm:$0xff]
        %v315 = vld [vmem:[#allocation8 + $0xc0] sm:$0xff]
        %v316 = vld [vmem:[#allocation8 + $0xc8] sm:$0xff]
        %v317 = vld [vmem:[#allocation8 + $0xd0] sm:$0xff]
        %v318 = vld [vmem:[#allocation8 + $0xd8] sm:$0xff]
        %v319 = vld [vmem:[#allocation8 + $0xe0] sm:$0xff]
        %v320 = vld [vmem:[#allocation8 + $0xe8] sm:$0xff]
        %v321 = vld [vmem:[#allocation8 + $0xf0] sm:$0xff]
        %v322 = vld [vmem:[#allocation8 + $0xf8] sm:$0xff]
        %v323 = vld [vmem:[#allocation10] sm:$0x3]
        %v325 = vlaneseq
        %v326 = vshrl.u32 %v325, 7
        %v327 = vsub.s32 0, %v326
        %v328 = vrot.slane %v323, %v327
        %v329 = vlaneseq
        %v330 = vshrl.u32 %v329, 7
        %v331 = vsub.s32 1, %v330
        %v332 = vrot.slane %v323, %v331
        %335 = vmatprep.subr.mxu0 %v322
        %336 = vmatpush1.msra.mxu0 %v321
        %337 = vmatprep.subr.mxu0 %v320
        %338 = vmatpush1.msra.mxu0 %v319
        %339 = vmatprep.subr.mxu0 %v318
        %340 = vmatpush1.msra.mxu0 %v317
        %341 = vmatprep.subr.mxu0 %v316
        %342 = vmatpush1.msra.mxu0 %v315
        %343 = vmatprep.subr.mxu0 %v314
        %344 = vmatpush1.msra.mxu0 %v313
        %345 = vmatprep.subr.mxu0 %v312
        %346 = vmatpush1.msra.mxu0 %v311
        %347 = vmatprep.subr.mxu0 %v310
        %348 = vmatpush1.msra.mxu0 %v309
        %349 = vmatprep.subr.mxu0 %v308
        %350 = vmatpush1.msra.mxu0 %v307
        %351 = vmatprep.subr.mxu0 %v306
        %352 = vmatpush1.msra.mxu0 %v305
        %353 = vmatprep.subr.mxu0 %v304
        %354 = vmatpush1.msra.mxu0 %v303
        %355 = vmatprep.subr.mxu0 %v302
        %356 = vmatpush1.msra.mxu0 %v301
        %357 = vmatprep.subr.mxu0 %v300
        %358 = vmatpush1.msra.mxu0 %v299
        %359 = vmatprep.subr.mxu0 %v298
        %360 = vmatpush1.msra.mxu0 %v297
        %361 = vmatprep.subr.mxu0 %v296
        %362 = vmatpush1.msra.mxu0 %v295
        %363 = vmatprep.subr.mxu0 %v294
        %364 = vmatpush1.msra.mxu0 %v293
        %365 = vmatprep.subr.mxu0 %v292
        %366 = vmatpush1.msra.mxu0 %v291
        %367 = vmatprep.subr.mxu0 0.0
        %368 = vmatpush2.msra.mxu0 0.0
        %369 = vmatprep.subr.mxu0 0.0
        %370 = vmatpush2.msra.mxu0 0.0
        %371 = vmatprep.subr.mxu0 0.0
        %372 = vmatpush2.msra.mxu0 0.0
        %373 = vmatprep.subr.mxu0 0.0
        %374 = vmatpush2.msra.mxu0 0.0
        %375 = vmatprep.subr.mxu0 0.0
        %376 = vmatpush2.msra.mxu0 0.0
        %377 = vmatprep.subr.mxu0 0.0
        %378 = vmatpush2.msra.mxu0 0.0
        %379 = vmatprep.subr.mxu0 0.0
        %380 = vmatpush2.msra.mxu0 0.0
        %381 = vmatprep.subr.mxu0 0.0
        %382 = vmatpush2.msra.mxu0 0.0
        %383 = vmatprep.subr.mxu0 0.0
        %384 = vmatpush2.msra.mxu0 0.0
        %385 = vmatprep.subr.mxu0 0.0
        %386 = vmatpush2.msra.mxu0 0.0
        %387 = vmatprep.subr.mxu0 0.0
        %388 = vmatpush2.msra.mxu0 0.0
        %389 = vmatprep.subr.mxu0 0.0
        %390 = vmatpush2.msra.mxu0 0.0
        %391 = vmatprep.subr.mxu0 0.0
        %392 = vmatpush2.msra.mxu0 0.0
        %393 = vmatprep.subr.mxu0 0.0
        %394 = vmatpush2.msra.mxu0 0.0
        %395 = vmatprep.subr.mxu0 0.0
        %396 = vmatpush2.msra.mxu0 0.0
        %397 = vmatprep.subr.mxu0 0.0
        %398 = vmatpush2.msra.mxu0 0.0
        %399 = vmatprep.mubr.f32.mxu0 0.0
        %400 = vmatmul.mubr.f32.gmra.mxu0 %v290
        %v401 = vpop.f32.mrf.mxu0
        %v402 = vadd.f32 %v328, %v401
        %v403 = vpop.f32.mrf.mxu0
        %v404 = vadd.f32 %v332, %v403
        %405 = vdwg.mxu0
        %v406 = vmax.f32 %v402, 0.0
        %v407 = vmax.f32 %v404, 0.0
        %v408 = vld [vmem:[#allocation11] sm:$0xff]
        %v409 = vld [vmem:[#allocation11 + $0x8] sm:$0xff]
        %v410 = vld [vmem:[#allocation11 + $0x10] sm:$0xff]
        %v411 = vld [vmem:[#allocation11 + $0x18] sm:$0xff]
        %v412 = vld [vmem:[#allocation11 + $0x20] sm:$0xff]
        %v413 = vld [vmem:[#allocation11 + $0x28] sm:$0xff]
        %v414 = vld [vmem:[#allocation11 + $0x30] sm:$0xff]
        %v415 = vld [vmem:[#allocation11 + $0x38] sm:$0xff]
        %v416 = vld [vmem:[#allocation11 + $0x40] sm:$0xff]
        %v417 = vld [vmem:[#allocation11 + $0x48] sm:$0xff]
        %v418 = vld [vmem:[#allocation11 + $0x50] sm:$0xff]
        %v419 = vld [vmem:[#allocation11 + $0x58] sm:$0xff]
        %v420 = vld [vmem:[#allocation11 + $0x60] sm:$0xff]
        %v421 = vld [vmem:[#allocation11 + $0x68] sm:$0xff]
        %v422 = vld [vmem:[#allocation11 + $0x70] sm:$0xff]
        %v423 = vld [vmem:[#allocation11 + $0x78] sm:$0xff]
        %v424 = vld [vmem:[#allocation11 + $0x80] sm:$0xff]
        %v425 = vld [vmem:[#allocation11 + $0x88] sm:$0xff]
        %v426 = vld [vmem:[#allocation11 + $0x90] sm:$0xff]
        %v427 = vld [vmem:[#allocation11 + $0x98] sm:$0xff]
        %v428 = vld [vmem:[#allocation11 + $0xa0] sm:$0xff]
        %v429 = vld [vmem:[#allocation11 + $0xa8] sm:$0xff]
        %v430 = vld [vmem:[#allocation11 + $0xb0] sm:$0xff]
        %v431 = vld [vmem:[#allocation11 + $0xb8] sm:$0xff]
        %v432 = vld [vmem:[#allocation11 + $0xc0] sm:$0xff]
        %v433 = vld [vmem:[#allocation11 + $0xc8] sm:$0xff]
        %v434 = vld [vmem:[#allocation11 + $0xd0] sm:$0xff]
        %v435 = vld [vmem:[#allocation11 + $0xd8] sm:$0xff]
        %v436 = vld [vmem:[#allocation11 + $0xe0] sm:$0xff]
        %v437 = vld [vmem:[#allocation11 + $0xe8] sm:$0xff]
        %v438 = vld [vmem:[#allocation11 + $0xf0] sm:$0xff]
        %v439 = vld [vmem:[#allocation11 + $0xf8] sm:$0xff]
        %v440 = vld [vmem:[#allocation13] sm:$0x1]
        %v442 = vlaneseq
        %v443 = vshrl.u32 %v442, 7
        %v444 = vsub.s32 0, %v443
        %v445 = vrot.slane %v440, %v444
        %447 = vmatprep.subr.mxu0 0.0
        %448 = vmatpush1.msra.mxu0 %v423
        %449 = vmatprep.subr.mxu0 0.0
        %450 = vmatpush1.msra.mxu0 %v422
        %451 = vmatprep.subr.mxu0 0.0
        %452 = vmatpush1.msra.mxu0 %v421
        %453 = vmatprep.subr.mxu0 0.0
        %454 = vmatpush1.msra.mxu0 %v420
        %455 = vmatprep.subr.mxu0 0.0
        %456 = vmatpush1.msra.mxu0 %v419
        %457 = vmatprep.subr.mxu0 0.0
        %458 = vmatpush1.msra.mxu0 %v418
        %459 = vmatprep.subr.mxu0 0.0
        %460 = vmatpush1.msra.mxu0 %v417
        %461 = vmatprep.subr.mxu0 0.0
        %462 = vmatpush1.msra.mxu0 %v416
        %463 = vmatprep.subr.mxu0 0.0
        %464 = vmatpush1.msra.mxu0 %v415
        %465 = vmatprep.subr.mxu0 0.0
        %466 = vmatpush1.msra.mxu0 %v414
        %467 = vmatprep.subr.mxu0 0.0
        %468 = vmatpush1.msra.mxu0 %v413
        %469 = vmatprep.subr.mxu0 0.0
        %470 = vmatpush1.msra.mxu0 %v412
        %471 = vmatprep.subr.mxu0 0.0
        %472 = vmatpush1.msra.mxu0 %v411
        %473 = vmatprep.subr.mxu0 0.0
        %474 = vmatpush1.msra.mxu0 %v410
        %475 = vmatprep.subr.mxu0 0.0
        %476 = vmatpush1.msra.mxu0 %v409
        %477 = vmatprep.subr.mxu0 0.0
        %478 = vmatpush1.msra.mxu0 %v408
        %479 = vmatprep.subr.mxu0 0.0
        %480 = vmatpush2.msra.mxu0 %v439
        %481 = vmatprep.subr.mxu0 0.0
        %482 = vmatpush2.msra.mxu0 %v438
        %483 = vmatprep.subr.mxu0 0.0
        %484 = vmatpush2.msra.mxu0 %v437
        %485 = vmatprep.subr.mxu0 0.0
        %486 = vmatpush2.msra.mxu0 %v436
        %487 = vmatprep.subr.mxu0 0.0
        %488 = vmatpush2.msra.mxu0 %v435
        %489 = vmatprep.subr.mxu0 0.0
        %490 = vmatpush2.msra.mxu0 %v434
        %491 = vmatprep.subr.mxu0 0.0
        %492 = vmatpush2.msra.mxu0 %v433
        %493 = vmatprep.subr.mxu0 0.0
        %494 = vmatpush2.msra.mxu0 %v432
        %495 = vmatprep.subr.mxu0 0.0
        %496 = vmatpush2.msra.mxu0 %v431
        %497 = vmatprep.subr.mxu0 0.0
        %498 = vmatpush2.msra.mxu0 %v430
        %499 = vmatprep.subr.mxu0 0.0
        %500 = vmatpush2.msra.mxu0 %v429
        %501 = vmatprep.subr.mxu0 0.0
        %502 = vmatpush2.msra.mxu0 %v428
        %503 = vmatprep.subr.mxu0 0.0
        %504 = vmatpush2.msra.mxu0 %v427
        %505 = vmatprep.subr.mxu0 0.0
        %506 = vmatpush2.msra.mxu0 %v426
        %507 = vmatprep.subr.mxu0 0.0
        %508 = vmatpush2.msra.mxu0 %v425
        %509 = vmatprep.subr.mxu0 0.0
        %510 = vmatpush2.msra.mxu0 %v424
        %511 = vmatprep.mubr.f32.mxu0 %v407
        %512 = vmatmul.mubr.f32.gmra.mxu0 %v406
        %v513 = vpop.f32.mrf.mxu0
        %v514 = vadd.f32 %v445, %v513
        %v515 = vpop.f32.mrf.mxu0
        %516 = vdwg.mxu0
        %v517 = vxor.u32 %v514, 2147483648
        %v518 = vmul.f32 %v517, 1.442695
        %v519 = vpow.pop %v518
        %v520 = vadd.f32 %v519, 1.0
        %v521 = vrcp.pop %v520
        %v522 = vmul.f32 1.0, %v521
        %523 = vst [vmem:[%s276] sm:$0xff] %v522
        %s524 = sand.u32 %s140, 1
        %s525 = scalar_lea.sflag [#allocation7], %s524
        %s526 = sand.u32 %s140, 1
        %s527 = smul.addr %s526, 8
        %s528 = scalar_lea.vmem [#allocation14], %s527
        // Predicated region
        $region68: #{tpu_custom_call.1} parent=39 // pred_check
          %p529 = pneg %p150
        $region69: #{tpu_custom_call.1} parent=39 // pred_check_branch
          %531 = sbr.rel (%p529) target = $region71
        $region70: #{tpu_custom_call.1} parent=39 // pred_region
          %s533 = ssub.s32 128, 128
          %534 = vsyncadd %s525, %s533
          %s535 = smul.addr %s27, 128
          %s536 = scalar_lea.hbm %s6, %s535
          %s538 = sshll.u32 %s528, 4
          %s539 = int_to_ptr.vmem [resolvable:$true] %s538
          %541 = dma.vmem_to_hbm [thread:$0]  %s539, 128, %s536, %s525
        $region71: #{tpu_custom_call.1} parent=39 // pred_fallthru
          _
      $region40: #{tpu_custom_call.1} parent=5 // pred_fallthru
        _
      %p542 = scmp.le.s32.totalorder 2, %s22
      // Predicated region
      $region72: #{tpu_custom_call.1} parent=5 // pred_check
        %p543 = pneg %p542
      $region73: #{tpu_custom_call.1} parent=5 // pred_check_branch
        %545 = sbr.rel (%p543) target = $region75
      $region74: #{tpu_custom_call.1} parent=5 // pred_region
        %s546 = ssub.s32 %s22, 2
        // Predicated region
        $region76: #{tpu_custom_call.1} parent=74 // pred_check
          %p547 = pneg %p156
        $region77: #{tpu_custom_call.1} parent=74 // pred_check_branch
          %549 = sbr.rel (%p547) target = $region79
        $region78: #{tpu_custom_call.1} parent=74 // pred_region
          %s550 = sand.u32 %s141, 1
          %s551 = scalar_lea.sflag [#allocation7], %s550
          %s552 = sand.u32 %s141, 1
          %s553 = smul.addr %s552, 8
          %s554 = scalar_lea.vmem [#allocation14], %s553
          %555 = dma.done %s551, 128
        $region79: #{tpu_custom_call.1} parent=74 // pred_fallthru
          _
      $region75: #{tpu_custom_call.1} parent=5 // pred_fallthru
        _
    $region6: #{tpu_custom_call.1} parent=1 // loop_footer
      %s26 = sadd.s32 1, %s22
    $region7: #{tpu_custom_call.1} parent=1 // loop_footer_branch
      %21 = sbr.rel target = $region3
    $region8: #{tpu_custom_call.1} parent=1 // loop_exit
      _
    %556 = vsyncpa [#allocation6], 1
    %s557 = scalar_lea.sflag [#allocation6], 1
    %558 = vsyncpa %s557, 1
    %559 = vsyncpa [#allocation9], 1
    %560 = vsyncpa [#allocation12], 1
    %561 = vsyncpa [#allocation7], 1
    %s562 = scalar_lea.sflag [#allocation7], 1
    %563 = vsyncpa %s562, 1

</llo_original>
